<compile_context>
chip_gen: v7x
topology: tpu7x:2x2x1
jax: 0.10.0
libtpu: 0.0.40
codegen_flags: <defaults>
</compile_context>

<pallas_src>
import functools

import jax
import jax.numpy as jnp
from jax.experimental import pallas as pl
from jax.experimental.pallas import tpu as pltpu


# --------------------------------------------------------------------------
# Fused kernel: one grid step = one batch image, both convs + ReLU + residual.
# Layout inside the kernel: channels on sublanes, flattened H*W on lanes.
# --------------------------------------------------------------------------
def _residual_block_kernel(x_ref, w1_ref, b1_ref, w2_ref, b2_ref, masks_ref,
                           o_ref, h_scr, *, C, H, W):
    f32 = jnp.float32
    HW = H * W
    offsets = [(ky, kx) for ky in (-1, 0, 1) for kx in (-1, 0, 1)]

    # Hoist the 9 edge-validity masks (each (C, HW)) out of both convs.
    masks = [masks_ref[t] for t in range(9)]

    def shift_lanes(v, s):
        # tap[p] = v[p + s] along the lane axis, zero-filled off the ends.
        if s == 0:
            return v
        if s > 0:
            z = jnp.zeros((C, s), f32)
            return jnp.concatenate([v[:, s:], z], axis=1)
        z = jnp.zeros((C, -s), f32)
        return jnp.concatenate([z, v[:, :HW + s]], axis=1)

    def conv3x3(get_row, w_ref, b_ref):
        # VPU formulation (n_feat = 4): contraction over (ci, ky, kx) as
        # lane-dense (C, HW) FMAs. Source row ci is loaded once per channel
        # and sublane-broadcast; the 9 spatial taps are lane shifts of it,
        # masked by the precomputed "same"-padding validity masks; per-tap
        # weights are (C, 1) columns that lane-broadcast over HW.
        acc = jnp.zeros((C, HW), f32)
        for ci in range(C):
            row_b = jnp.broadcast_to(get_row(ci).astype(f32), (C, HW))
            for t, (ky, kx) in enumerate(offsets):
                s = ky * W + kx
                if ky == 0 and kx == 0:
                    tap = row_b                      # center tap: no shift, no mask
                else:
                    tap = shift_lanes(row_b, s) * masks[t]
                acc = acc + w_ref[t * C + ci] * tap  # (C,1) * (C,HW)
        return acc + b_ref[...]                      # bias: (C,1) lane-broadcast

    # conv1 + bias + ReLU -> tiny dense VMEM scratch (never leaves VMEM).
    h1 = conv3x3(lambda ci: x_ref[0, ci:ci + 1, :], w1_ref, b1_ref)
    h_scr[...] = jnp.maximum(h1, 0.0)

    # conv2 + bias (+ ESAplus identity, see TODO) + residual skip.
    y = conv3x3(lambda ci: h_scr[ci:ci + 1, :], w2_ref, b2_ref)
    o_ref[0] = (y + x_ref[0].astype(f32)).astype(o_ref.dtype)


# --------------------------------------------------------------------------
# Wrapper: free reshape to the lane-dense (N, C, H*W) layout, one pallas_call.
# --------------------------------------------------------------------------
def residual_block_forward(x_nchw, params):
    """ResidualBlock forward. x_nchw: (N, C, H, W) -> (N, C, H, W)."""
    N, C, H, W = x_nchw.shape
    HW = H * W

    # Lane-dense layout: fold H*W (=256, a multiple of 128) onto the lane axis.
    # Row-major reshape: no transpose, no data movement pass.
    x2 = x_nchw.reshape(N, C, HW)

    def pack_w(w_oihw):
        # PyTorch OIHW (Cout, Cin, 3, 3) -> (9*Cin, Cout, 1); row t*C + ci holds
        # the (Cout,) weight column for input channel ci, tap t = (ky+1)*3+(kx+1).
        return jnp.transpose(w_oihw, (2, 3, 1, 0)).reshape(9 * C, C)[:, :, None]

    w1p = pack_w(params["w1"]).astype(jnp.float32)
    w2p = pack_w(params["w2"]).astype(jnp.float32)
    b1p = params["b1"].reshape(C, 1).astype(jnp.float32)
    b2p = params["b2"].reshape(C, 1).astype(jnp.float32)

    # 9 "same"-padding validity masks over the flattened (H, W) plane.
    yy = jnp.arange(H)[:, None]
    xx = jnp.arange(W)[None, :]
    mask_list = []
    for ky in (-1, 0, 1):
        for kx in (-1, 0, 1):
            m = ((yy + ky >= 0) & (yy + ky < H) &
                 (xx + kx >= 0) & (xx + kx < W)).reshape(1, HW)
            mask_list.append(jnp.broadcast_to(m, (C, HW)))
    masks = jnp.stack(mask_list).astype(jnp.float32)            # (9, C, HW)

    kernel = functools.partial(_residual_block_kernel, C=C, H=H, W=W)

    out = pl.pallas_call(
        kernel,
        out_shape=jax.ShapeDtypeStruct((N, C, HW), x_nchw.dtype),
        grid_spec=pltpu.PrefetchScalarGridSpec(
            num_scalar_prefetch=0,
            grid=(N,),
            in_specs=[
                pl.BlockSpec((1, C, HW), lambda n: (n, 0, 0)),       # x (per image)
                pl.BlockSpec((9 * C, C, 1), lambda n: (0, 0, 0)),    # w1 packed
                pl.BlockSpec((C, 1), lambda n: (0, 0)),              # b1
                pl.BlockSpec((9 * C, C, 1), lambda n: (0, 0, 0)),    # w2 packed
                pl.BlockSpec((C, 1), lambda n: (0, 0)),              # b2
                pl.BlockSpec((9, C, HW), lambda n: (0, 0, 0)),       # edge masks
            ],
            out_specs=pl.BlockSpec((1, C, HW), lambda n: (n, 0, 0)),
            scratch_shapes=[pltpu.VMEM((C, HW), jnp.float32)],       # h (dense, 4 KiB)
        ),
        compiler_params=pltpu.CompilerParams(
            dimension_semantics=("parallel",),
            # vmem_limit_bytes: defaults are ample for this working set; raise
            # when moving to large row tiles on real SR resolutions.
        ),
    )(x2, w1p, b1p, w2p, b2p, masks)

    return out.reshape(N, C, H, W)


# --------------------------------------------------------------------------
# Pure-JAX reference for correctness checking
# --------------------------------------------------------------------------
def _ref_forward(x_nchw, params):
    def conv(x, w_oihw, b):
        y = jax.lax.conv_general_dilated(x, w_oihw, window_strides=(1, 1),
                                         padding="SAME")
        return y + b[None, :, None, None]

    h = jax.nn.relu(conv(x_nchw, params["w1"], params["b1"]))
    h = conv(h, params["w2"], params["b2"])
    return h + x_nchw


if __name__ == "__main__":
    # Small shapes consistent with the module: n_feat=4, kernel_size=3.
    N, C, H, W = 2, 4, 16, 16

    key = jax.random.PRNGKey(0)
    kx, kw1, kb1, kw2, kb2 = jax.random.split(key, 5)

    x = jax.random.normal(kx, (N, C, H, W), dtype=jnp.float32)
    params = {
        # weights stored in PyTorch OIHW layout: (Cout, Cin, kh, kw)
        "w1": 0.1 * jax.random.normal(kw1, (C, C, 3, 3), dtype=jnp.float32),
        "b1": 0.05 * jax.random.normal(kb1, (C,), dtype=jnp.float32),
        "w2": 0.1 * jax.random.normal(kw2, (C, C, 3, 3), dtype=jnp.float32),
        "b2": 0.05 * jax.random.normal(kb2, (C,), dtype=jnp.float32),
    }

    out = jax.block_until_ready(residual_block_forward(x, params))
    ref = jax.block_until_ready(_ref_forward(x, params))

    assert out.shape == (N, C, H, W)
    assert jnp.allclose(out, ref, atol=1e-4, rtol=1e-4), "mismatch vs reference"

    print("KERNEL_OK")
</pallas_src>

<mosaic_0001>
module attributes {stable_mosaic.version = 11 : i64} {
  func.func @_residual_block_kernel(%arg0: i32, %arg1: memref<1x4x256xf32, #tpu.memory_space<vmem>>, %arg2: memref<36x4x1xf32, #tpu.memory_space<vmem>>, %arg3: memref<4x1xf32, #tpu.memory_space<vmem>>, %arg4: memref<36x4x1xf32, #tpu.memory_space<vmem>>, %arg5: memref<4x1xf32, #tpu.memory_space<vmem>>, %arg6: memref<9x4x256xf32, #tpu.memory_space<vmem>>, %arg7: memref<1x4x256xf32, #tpu.memory_space<vmem>>, %arg8: memref<4x256xf32, #tpu.memory_space<vmem>>) attributes {dimension_semantics = [#tpu.dimension_semantics<parallel>], iteration_bounds = array<i64: 2>, scalar_prefetch = 0 : i64, scratch_operands = 1 : i64, tpu.core_type = #tpu.core_type<tc>, window_params = [{transform_indices = @transform_0, window_bounds = array<i64: 1, 4, 256>}, {pipeline_mode = #tpu.pipeline_mode<synchronous>, transform_indices = @transform_1, window_bounds = array<i64: 36, 4, 1>}, {pipeline_mode = #tpu.pipeline_mode<synchronous>, transform_indices = @transform_2, window_bounds = array<i64: 4, 1>}, {pipeline_mode = #tpu.pipeline_mode<synchronous>, transform_indices = @transform_3, window_bounds = array<i64: 36, 4, 1>}, {pipeline_mode = #tpu.pipeline_mode<synchronous>, transform_indices = @transform_4, window_bounds = array<i64: 4, 1>}, {pipeline_mode = #tpu.pipeline_mode<synchronous>, transform_indices = @transform_5, window_bounds = array<i64: 9, 4, 256>}, {transform_indices = @transform_6, window_bounds = array<i64: 1, 4, 256>}]} {
    %c0 = arith.constant 0 : index
    %c0_0 = arith.constant 0 : index
    %c0_1 = arith.constant 0 : index
    %0 = vector.load %arg6[%c0, %c0_0, %c0_1] : memref<9x4x256xf32, #tpu.memory_space<vmem>>, vector<1x4x256xf32>
    %1 = vector.shape_cast %0 : vector<1x4x256xf32> to vector<4x256xf32>
    %c1 = arith.constant 1 : index
    %c0_2 = arith.constant 0 : index
    %c0_3 = arith.constant 0 : index
    %2 = vector.load %arg6[%c1, %c0_2, %c0_3] : memref<9x4x256xf32, #tpu.memory_space<vmem>>, vector<1x4x256xf32>
    %3 = vector.shape_cast %2 : vector<1x4x256xf32> to vector<4x256xf32>
    %c2 = arith.constant 2 : index
    %c0_4 = arith.constant 0 : index
    %c0_5 = arith.constant 0 : index
    %4 = vector.load %arg6[%c2, %c0_4, %c0_5] : memref<9x4x256xf32, #tpu.memory_space<vmem>>, vector<1x4x256xf32>
    %5 = vector.shape_cast %4 : vector<1x4x256xf32> to vector<4x256xf32>
    %c3 = arith.constant 3 : index
    %c0_6 = arith.constant 0 : index
    %c0_7 = arith.constant 0 : index
    %6 = vector.load %arg6[%c3, %c0_6, %c0_7] : memref<9x4x256xf32, #tpu.memory_space<vmem>>, vector<1x4x256xf32>
    %7 = vector.shape_cast %6 : vector<1x4x256xf32> to vector<4x256xf32>
    %c5 = arith.constant 5 : index
    %c0_8 = arith.constant 0 : index
    %c0_9 = arith.constant 0 : index
    %8 = vector.load %arg6[%c5, %c0_8, %c0_9] : memref<9x4x256xf32, #tpu.memory_space<vmem>>, vector<1x4x256xf32>
    %9 = vector.shape_cast %8 : vector<1x4x256xf32> to vector<4x256xf32>
    %c6 = arith.constant 6 : index
    %c0_10 = arith.constant 0 : index
    %c0_11 = arith.constant 0 : index
    %10 = vector.load %arg6[%c6, %c0_10, %c0_11] : memref<9x4x256xf32, #tpu.memory_space<vmem>>, vector<1x4x256xf32>
    %11 = vector.shape_cast %10 : vector<1x4x256xf32> to vector<4x256xf32>
    %c7 = arith.constant 7 : index
    %c0_12 = arith.constant 0 : index
    %c0_13 = arith.constant 0 : index
    %12 = vector.load %arg6[%c7, %c0_12, %c0_13] : memref<9x4x256xf32, #tpu.memory_space<vmem>>, vector<1x4x256xf32>
    %13 = vector.shape_cast %12 : vector<1x4x256xf32> to vector<4x256xf32>
    %c8 = arith.constant 8 : index
    %c0_14 = arith.constant 0 : index
    %c0_15 = arith.constant 0 : index
    %14 = vector.load %arg6[%c8, %c0_14, %c0_15] : memref<9x4x256xf32, #tpu.memory_space<vmem>>, vector<1x4x256xf32>
    %15 = vector.shape_cast %14 : vector<1x4x256xf32> to vector<4x256xf32>
    %cst = arith.constant 0.000000e+00 : f32
    %16 = vector.broadcast %cst : f32 to vector<4x256xf32>
    %c0_16 = arith.constant 0 : index
    %c0_17 = arith.constant 0 : index
    %c0_18 = arith.constant 0 : index
    %17 = vector.load %arg1[%c0_16, %c0_17, %c0_18] : memref<1x4x256xf32, #tpu.memory_space<vmem>>, vector<1x1x256xf32>
    %18 = vector.shape_cast %17 : vector<1x1x256xf32> to vector<1x256xf32>
    %19 = vector.shape_cast %18 : vector<1x256xf32> to vector<1x256xf32>
    %20 = vector.broadcast %19 : vector<1x256xf32> to vector<4x256xf32>
    %cst_19 = arith.constant 0.000000e+00 : f32
    %21 = vector.broadcast %cst_19 : f32 to vector<4x17xf32>
    %22 = vector.extract_strided_slice %20 {offsets = [0, 0], sizes = [4, 239], strides = [1, 1]} : vector<4x256xf32> to vector<4x239xf32>
    %23 = tpu.concatenate %21, %22 in 1 : vector<4x17xf32>, vector<4x239xf32> -> vector<4x256xf32>
    %24 = arith.mulf %23, %1 : vector<4x256xf32>
    %c0_20 = arith.constant 0 : index
    %c0_21 = arith.constant 0 : index
    %c0_22 = arith.constant 0 : index
    %25 = vector.load %arg2[%c0_20, %c0_21, %c0_22] : memref<36x4x1xf32, #tpu.memory_space<vmem>>, vector<1x4x1xf32>
    %26 = vector.shape_cast %25 : vector<1x4x1xf32> to vector<4x1xf32>
    %27 = vector.broadcast %26 : vector<4x1xf32> to vector<4x256xf32>
    %28 = arith.mulf %27, %24 : vector<4x256xf32>
    %29 = arith.addf %16, %28 : vector<4x256xf32>
    %cst_23 = arith.constant 0.000000e+00 : f32
    %30 = vector.broadcast %cst_23 : f32 to vector<4x16xf32>
    %31 = vector.extract_strided_slice %20 {offsets = [0, 0], sizes = [4, 240], strides = [1, 1]} : vector<4x256xf32> to vector<4x240xf32>
    %32 = tpu.concatenate %30, %31 in 1 : vector<4x16xf32>, vector<4x240xf32> -> vector<4x256xf32>
    %33 = arith.mulf %32, %3 : vector<4x256xf32>
    %c4 = arith.constant 4 : index
    %c0_24 = arith.constant 0 : index
    %c0_25 = arith.constant 0 : index
    %34 = vector.load %arg2[%c4, %c0_24, %c0_25] : memref<36x4x1xf32, #tpu.memory_space<vmem>>, vector<1x4x1xf32>
    %35 = vector.shape_cast %34 : vector<1x4x1xf32> to vector<4x1xf32>
    %36 = vector.broadcast %35 : vector<4x1xf32> to vector<4x256xf32>
    %37 = arith.mulf %36, %33 : vector<4x256xf32>
    %38 = arith.addf %29, %37 : vector<4x256xf32>
    %cst_26 = arith.constant 0.000000e+00 : f32
    %39 = vector.broadcast %cst_26 : f32 to vector<4x15xf32>
    %40 = vector.extract_strided_slice %20 {offsets = [0, 0], sizes = [4, 241], strides = [1, 1]} : vector<4x256xf32> to vector<4x241xf32>
    %41 = tpu.concatenate %39, %40 in 1 : vector<4x15xf32>, vector<4x241xf32> -> vector<4x256xf32>
    %42 = arith.mulf %41, %5 : vector<4x256xf32>
    %c8_27 = arith.constant 8 : index
    %c0_28 = arith.constant 0 : index
    %c0_29 = arith.constant 0 : index
    %43 = vector.load %arg2[%c8_27, %c0_28, %c0_29] : memref<36x4x1xf32, #tpu.memory_space<vmem>>, vector<1x4x1xf32>
    %44 = vector.shape_cast %43 : vector<1x4x1xf32> to vector<4x1xf32>
    %45 = vector.broadcast %44 : vector<4x1xf32> to vector<4x256xf32>
    %46 = arith.mulf %45, %42 : vector<4x256xf32>
    %47 = arith.addf %38, %46 : vector<4x256xf32>
    %cst_30 = arith.constant 0.000000e+00 : f32
    %48 = vector.broadcast %cst_30 : f32 to vector<4x1xf32>
    %49 = vector.extract_strided_slice %20 {offsets = [0, 0], sizes = [4, 255], strides = [1, 1]} : vector<4x256xf32> to vector<4x255xf32>
    %50 = tpu.concatenate %48, %49 in 1 : vector<4x1xf32>, vector<4x255xf32> -> vector<4x256xf32>
    %51 = arith.mulf %50, %7 : vector<4x256xf32>
    %c12 = arith.constant 12 : index
    %c0_31 = arith.constant 0 : index
    %c0_32 = arith.constant 0 : index
    %52 = vector.load %arg2[%c12, %c0_31, %c0_32] : memref<36x4x1xf32, #tpu.memory_space<vmem>>, vector<1x4x1xf32>
    %53 = vector.shape_cast %52 : vector<1x4x1xf32> to vector<4x1xf32>
    %54 = vector.broadcast %53 : vector<4x1xf32> to vector<4x256xf32>
    %55 = arith.mulf %54, %51 : vector<4x256xf32>
    %56 = arith.addf %47, %55 : vector<4x256xf32>
    %c16 = arith.constant 16 : index
    %c0_33 = arith.constant 0 : index
    %c0_34 = arith.constant 0 : index
    %57 = vector.load %arg2[%c16, %c0_33, %c0_34] : memref<36x4x1xf32, #tpu.memory_space<vmem>>, vector<1x4x1xf32>
    %58 = vector.shape_cast %57 : vector<1x4x1xf32> to vector<4x1xf32>
    %59 = vector.broadcast %58 : vector<4x1xf32> to vector<4x256xf32>
    %60 = arith.mulf %59, %20 : vector<4x256xf32>
    %61 = arith.addf %56, %60 : vector<4x256xf32>
    %cst_35 = arith.constant 0.000000e+00 : f32
    %62 = vector.broadcast %cst_35 : f32 to vector<4x1xf32>
    %63 = vector.extract_strided_slice %20 {offsets = [0, 1], sizes = [4, 255], strides = [1, 1]} : vector<4x256xf32> to vector<4x255xf32>
    %64 = tpu.concatenate %63, %62 in 1 : vector<4x255xf32>, vector<4x1xf32> -> vector<4x256xf32>
    %65 = arith.mulf %64, %9 : vector<4x256xf32>
    %c20 = arith.constant 20 : index
    %c0_36 = arith.constant 0 : index
    %c0_37 = arith.constant 0 : index
    %66 = vector.load %arg2[%c20, %c0_36, %c0_37] : memref<36x4x1xf32, #tpu.memory_space<vmem>>, vector<1x4x1xf32>
    %67 = vector.shape_cast %66 : vector<1x4x1xf32> to vector<4x1xf32>
    %68 = vector.broadcast %67 : vector<4x1xf32> to vector<4x256xf32>
    %69 = arith.mulf %68, %65 : vector<4x256xf32>
    %70 = arith.addf %61, %69 : vector<4x256xf32>
    %cst_38 = arith.constant 0.000000e+00 : f32
    %71 = vector.broadcast %cst_38 : f32 to vector<4x15xf32>
    %72 = vector.extract_strided_slice %20 {offsets = [0, 15], sizes = [4, 241], strides = [1, 1]} : vector<4x256xf32> to vector<4x241xf32>
    %73 = tpu.concatenate %72, %71 in 1 : vector<4x241xf32>, vector<4x15xf32> -> vector<4x256xf32>
    %74 = arith.mulf %73, %11 : vector<4x256xf32>
    %c24 = arith.constant 24 : index
    %c0_39 = arith.constant 0 : index
    %c0_40 = arith.constant 0 : index
    %75 = vector.load %arg2[%c24, %c0_39, %c0_40] : memref<36x4x1xf32, #tpu.memory_space<vmem>>, vector<1x4x1xf32>
    %76 = vector.shape_cast %75 : vector<1x4x1xf32> to vector<4x1xf32>
    %77 = vector.broadcast %76 : vector<4x1xf32> to vector<4x256xf32>
    %78 = arith.mulf %77, %74 : vector<4x256xf32>
    %79 = arith.addf %70, %78 : vector<4x256xf32>
    %cst_41 = arith.constant 0.000000e+00 : f32
    %80 = vector.broadcast %cst_41 : f32 to vector<4x16xf32>
    %81 = vector.extract_strided_slice %20 {offsets = [0, 16], sizes = [4, 240], strides = [1, 1]} : vector<4x256xf32> to vector<4x240xf32>
    %82 = tpu.concatenate %81, %80 in 1 : vector<4x240xf32>, vector<4x16xf32> -> vector<4x256xf32>
    %83 = arith.mulf %82, %13 : vector<4x256xf32>
    %c28 = arith.constant 28 : index
    %c0_42 = arith.constant 0 : index
    %c0_43 = arith.constant 0 : index
    %84 = vector.load %arg2[%c28, %c0_42, %c0_43] : memref<36x4x1xf32, #tpu.memory_space<vmem>>, vector<1x4x1xf32>
    %85 = vector.shape_cast %84 : vector<1x4x1xf32> to vector<4x1xf32>
    %86 = vector.broadcast %85 : vector<4x1xf32> to vector<4x256xf32>
    %87 = arith.mulf %86, %83 : vector<4x256xf32>
    %88 = arith.addf %79, %87 : vector<4x256xf32>
    %cst_44 = arith.constant 0.000000e+00 : f32
    %89 = vector.broadcast %cst_44 : f32 to vector<4x17xf32>
    %90 = vector.extract_strided_slice %20 {offsets = [0, 17], sizes = [4, 239], strides = [1, 1]} : vector<4x256xf32> to vector<4x239xf32>
    %91 = tpu.concatenate %90, %89 in 1 : vector<4x239xf32>, vector<4x17xf32> -> vector<4x256xf32>
    %92 = arith.mulf %91, %15 : vector<4x256xf32>
    %c32 = arith.constant 32 : index
    %c0_45 = arith.constant 0 : index
    %c0_46 = arith.constant 0 : index
    %93 = vector.load %arg2[%c32, %c0_45, %c0_46] : memref<36x4x1xf32, #tpu.memory_space<vmem>>, vector<1x4x1xf32>
    %94 = vector.shape_cast %93 : vector<1x4x1xf32> to vector<4x1xf32>
    %95 = vector.broadcast %94 : vector<4x1xf32> to vector<4x256xf32>
    %96 = arith.mulf %95, %92 : vector<4x256xf32>
    %97 = arith.addf %88, %96 : vector<4x256xf32>
    %c0_47 = arith.constant 0 : index
    %c1_48 = arith.constant 1 : index
    %c0_49 = arith.constant 0 : index
    %98 = vector.load %arg1[%c0_47, %c1_48, %c0_49] : memref<1x4x256xf32, #tpu.memory_space<vmem>>, vector<1x1x256xf32>
    %99 = vector.shape_cast %98 : vector<1x1x256xf32> to vector<1x256xf32>
    %100 = vector.shape_cast %99 : vector<1x256xf32> to vector<1x256xf32>
    %101 = vector.broadcast %100 : vector<1x256xf32> to vector<4x256xf32>
    %cst_50 = arith.constant 0.000000e+00 : f32
    %102 = vector.broadcast %cst_50 : f32 to vector<4x17xf32>
    %103 = vector.extract_strided_slice %101 {offsets = [0, 0], sizes = [4, 239], strides = [1, 1]} : vector<4x256xf32> to vector<4x239xf32>
    %104 = tpu.concatenate %102, %103 in 1 : vector<4x17xf32>, vector<4x239xf32> -> vector<4x256xf32>
    %105 = arith.mulf %104, %1 : vector<4x256xf32>
    %c1_51 = arith.constant 1 : index
    %c0_52 = arith.constant 0 : index
    %c0_53 = arith.constant 0 : index
    %106 = vector.load %arg2[%c1_51, %c0_52, %c0_53] : memref<36x4x1xf32, #tpu.memory_space<vmem>>, vector<1x4x1xf32>
    %107 = vector.shape_cast %106 : vector<1x4x1xf32> to vector<4x1xf32>
    %108 = vector.broadcast %107 : vector<4x1xf32> to vector<4x256xf32>
    %109 = arith.mulf %108, %105 : vector<4x256xf32>
    %110 = arith.addf %97, %109 : vector<4x256xf32>
    %cst_54 = arith.constant 0.000000e+00 : f32
    %111 = vector.broadcast %cst_54 : f32 to vector<4x16xf32>
    %112 = vector.extract_strided_slice %101 {offsets = [0, 0], sizes = [4, 240], strides = [1, 1]} : vector<4x256xf32> to vector<4x240xf32>
    %113 = tpu.concatenate %111, %112 in 1 : vector<4x16xf32>, vector<4x240xf32> -> vector<4x256xf32>
    %114 = arith.mulf %113, %3 : vector<4x256xf32>
    %c5_55 = arith.constant 5 : index
    %c0_56 = arith.constant 0 : index
    %c0_57 = arith.constant 0 : index
    %115 = vector.load %arg2[%c5_55, %c0_56, %c0_57] : memref<36x4x1xf32, #tpu.memory_space<vmem>>, vector<1x4x1xf32>
    %116 = vector.shape_cast %115 : vector<1x4x1xf32> to vector<4x1xf32>
    %117 = vector.broadcast %116 : vector<4x1xf32> to vector<4x256xf32>
    %118 = arith.mulf %117, %114 : vector<4x256xf32>
    %119 = arith.addf %110, %118 : vector<4x256xf32>
    %cst_58 = arith.constant 0.000000e+00 : f32
    %120 = vector.broadcast %cst_58 : f32 to vector<4x15xf32>
    %121 = vector.extract_strided_slice %101 {offsets = [0, 0], sizes = [4, 241], strides = [1, 1]} : vector<4x256xf32> to vector<4x241xf32>
    %122 = tpu.concatenate %120, %121 in 1 : vector<4x15xf32>, vector<4x241xf32> -> vector<4x256xf32>
    %123 = arith.mulf %122, %5 : vector<4x256xf32>
    %c9 = arith.constant 9 : index
    %c0_59 = arith.constant 0 : index
    %c0_60 = arith.constant 0 : index
    %124 = vector.load %arg2[%c9, %c0_59, %c0_60] : memref<36x4x1xf32, #tpu.memory_space<vmem>>, vector<1x4x1xf32>
    %125 = vector.shape_cast %124 : vector<1x4x1xf32> to vector<4x1xf32>
    %126 = vector.broadcast %125 : vector<4x1xf32> to vector<4x256xf32>
    %127 = arith.mulf %126, %123 : vector<4x256xf32>
    %128 = arith.addf %119, %127 : vector<4x256xf32>
    %cst_61 = arith.constant 0.000000e+00 : f32
    %129 = vector.broadcast %cst_61 : f32 to vector<4x1xf32>
    %130 = vector.extract_strided_slice %101 {offsets = [0, 0], sizes = [4, 255], strides = [1, 1]} : vector<4x256xf32> to vector<4x255xf32>
    %131 = tpu.concatenate %129, %130 in 1 : vector<4x1xf32>, vector<4x255xf32> -> vector<4x256xf32>
    %132 = arith.mulf %131, %7 : vector<4x256xf32>
    %c13 = arith.constant 13 : index
    %c0_62 = arith.constant 0 : index
    %c0_63 = arith.constant 0 : index
    %133 = vector.load %arg2[%c13, %c0_62, %c0_63] : memref<36x4x1xf32, #tpu.memory_space<vmem>>, vector<1x4x1xf32>
    %134 = vector.shape_cast %133 : vector<1x4x1xf32> to vector<4x1xf32>
    %135 = vector.broadcast %134 : vector<4x1xf32> to vector<4x256xf32>
    %136 = arith.mulf %135, %132 : vector<4x256xf32>
    %137 = arith.addf %128, %136 : vector<4x256xf32>
    %c17 = arith.constant 17 : index
    %c0_64 = arith.constant 0 : index
    %c0_65 = arith.constant 0 : index
    %138 = vector.load %arg2[%c17, %c0_64, %c0_65] : memref<36x4x1xf32, #tpu.memory_space<vmem>>, vector<1x4x1xf32>
    %139 = vector.shape_cast %138 : vector<1x4x1xf32> to vector<4x1xf32>
    %140 = vector.broadcast %139 : vector<4x1xf32> to vector<4x256xf32>
    %141 = arith.mulf %140, %101 : vector<4x256xf32>
    %142 = arith.addf %137, %141 : vector<4x256xf32>
    %cst_66 = arith.constant 0.000000e+00 : f32
    %143 = vector.broadcast %cst_66 : f32 to vector<4x1xf32>
    %144 = vector.extract_strided_slice %101 {offsets = [0, 1], sizes = [4, 255], strides = [1, 1]} : vector<4x256xf32> to vector<4x255xf32>
    %145 = tpu.concatenate %144, %143 in 1 : vector<4x255xf32>, vector<4x1xf32> -> vector<4x256xf32>
    %146 = arith.mulf %145, %9 : vector<4x256xf32>
    %c21 = arith.constant 21 : index
    %c0_67 = arith.constant 0 : index
    %c0_68 = arith.constant 0 : index
    %147 = vector.load %arg2[%c21, %c0_67, %c0_68] : memref<36x4x1xf32, #tpu.memory_space<vmem>>, vector<1x4x1xf32>
    %148 = vector.shape_cast %147 : vector<1x4x1xf32> to vector<4x1xf32>
    %149 = vector.broadcast %148 : vector<4x1xf32> to vector<4x256xf32>
    %150 = arith.mulf %149, %146 : vector<4x256xf32>
    %151 = arith.addf %142, %150 : vector<4x256xf32>
    %cst_69 = arith.constant 0.000000e+00 : f32
    %152 = vector.broadcast %cst_69 : f32 to vector<4x15xf32>
    %153 = vector.extract_strided_slice %101 {offsets = [0, 15], sizes = [4, 241], strides = [1, 1]} : vector<4x256xf32> to vector<4x241xf32>
    %154 = tpu.concatenate %153, %152 in 1 : vector<4x241xf32>, vector<4x15xf32> -> vector<4x256xf32>
    %155 = arith.mulf %154, %11 : vector<4x256xf32>
    %c25 = arith.constant 25 : index
    %c0_70 = arith.constant 0 : index
    %c0_71 = arith.constant 0 : index
    %156 = vector.load %arg2[%c25, %c0_70, %c0_71] : memref<36x4x1xf32, #tpu.memory_space<vmem>>, vector<1x4x1xf32>
    %157 = vector.shape_cast %156 : vector<1x4x1xf32> to vector<4x1xf32>
    %158 = vector.broadcast %157 : vector<4x1xf32> to vector<4x256xf32>
    %159 = arith.mulf %158, %155 : vector<4x256xf32>
    %160 = arith.addf %151, %159 : vector<4x256xf32>
    %cst_72 = arith.constant 0.000000e+00 : f32
    %161 = vector.broadcast %cst_72 : f32 to vector<4x16xf32>
    %162 = vector.extract_strided_slice %101 {offsets = [0, 16], sizes = [4, 240], strides = [1, 1]} : vector<4x256xf32> to vector<4x240xf32>
    %163 = tpu.concatenate %162, %161 in 1 : vector<4x240xf32>, vector<4x16xf32> -> vector<4x256xf32>
    %164 = arith.mulf %163, %13 : vector<4x256xf32>
    %c29 = arith.constant 29 : index
    %c0_73 = arith.constant 0 : index
    %c0_74 = arith.constant 0 : index
    %165 = vector.load %arg2[%c29, %c0_73, %c0_74] : memref<36x4x1xf32, #tpu.memory_space<vmem>>, vector<1x4x1xf32>
    %166 = vector.shape_cast %165 : vector<1x4x1xf32> to vector<4x1xf32>
    %167 = vector.broadcast %166 : vector<4x1xf32> to vector<4x256xf32>
    %168 = arith.mulf %167, %164 : vector<4x256xf32>
    %169 = arith.addf %160, %168 : vector<4x256xf32>
    %cst_75 = arith.constant 0.000000e+00 : f32
    %170 = vector.broadcast %cst_75 : f32 to vector<4x17xf32>
    %171 = vector.extract_strided_slice %101 {offsets = [0, 17], sizes = [4, 239], strides = [1, 1]} : vector<4x256xf32> to vector<4x239xf32>
    %172 = tpu.concatenate %171, %170 in 1 : vector<4x239xf32>, vector<4x17xf32> -> vector<4x256xf32>
    %173 = arith.mulf %172, %15 : vector<4x256xf32>
    %c33 = arith.constant 33 : index
    %c0_76 = arith.constant 0 : index
    %c0_77 = arith.constant 0 : index
    %174 = vector.load %arg2[%c33, %c0_76, %c0_77] : memref<36x4x1xf32, #tpu.memory_space<vmem>>, vector<1x4x1xf32>
    %175 = vector.shape_cast %174 : vector<1x4x1xf32> to vector<4x1xf32>
    %176 = vector.broadcast %175 : vector<4x1xf32> to vector<4x256xf32>
    %177 = arith.mulf %176, %173 : vector<4x256xf32>
    %178 = arith.addf %169, %177 : vector<4x256xf32>
    %c0_78 = arith.constant 0 : index
    %c2_79 = arith.constant 2 : index
    %c0_80 = arith.constant 0 : index
    %179 = vector.load %arg1[%c0_78, %c2_79, %c0_80] : memref<1x4x256xf32, #tpu.memory_space<vmem>>, vector<1x1x256xf32>
    %180 = vector.shape_cast %179 : vector<1x1x256xf32> to vector<1x256xf32>
    %181 = vector.shape_cast %180 : vector<1x256xf32> to vector<1x256xf32>
    %182 = vector.broadcast %181 : vector<1x256xf32> to vector<4x256xf32>
    %cst_81 = arith.constant 0.000000e+00 : f32
    %183 = vector.broadcast %cst_81 : f32 to vector<4x17xf32>
    %184 = vector.extract_strided_slice %182 {offsets = [0, 0], sizes = [4, 239], strides = [1, 1]} : vector<4x256xf32> to vector<4x239xf32>
    %185 = tpu.concatenate %183, %184 in 1 : vector<4x17xf32>, vector<4x239xf32> -> vector<4x256xf32>
    %186 = arith.mulf %185, %1 : vector<4x256xf32>
    %c2_82 = arith.constant 2 : index
    %c0_83 = arith.constant 0 : index
    %c0_84 = arith.constant 0 : index
    %187 = vector.load %arg2[%c2_82, %c0_83, %c0_84] : memref<36x4x1xf32, #tpu.memory_space<vmem>>, vector<1x4x1xf32>
    %188 = vector.shape_cast %187 : vector<1x4x1xf32> to vector<4x1xf32>
    %189 = vector.broadcast %188 : vector<4x1xf32> to vector<4x256xf32>
    %190 = arith.mulf %189, %186 : vector<4x256xf32>
    %191 = arith.addf %178, %190 : vector<4x256xf32>
    %cst_85 = arith.constant 0.000000e+00 : f32
    %192 = vector.broadcast %cst_85 : f32 to vector<4x16xf32>
    %193 = vector.extract_strided_slice %182 {offsets = [0, 0], sizes = [4, 240], strides = [1, 1]} : vector<4x256xf32> to vector<4x240xf32>
    %194 = tpu.concatenate %192, %193 in 1 : vector<4x16xf32>, vector<4x240xf32> -> vector<4x256xf32>
    %195 = arith.mulf %194, %3 : vector<4x256xf32>
    %c6_86 = arith.constant 6 : index
    %c0_87 = arith.constant 0 : index
    %c0_88 = arith.constant 0 : index
    %196 = vector.load %arg2[%c6_86, %c0_87, %c0_88] : memref<36x4x1xf32, #tpu.memory_space<vmem>>, vector<1x4x1xf32>
    %197 = vector.shape_cast %196 : vector<1x4x1xf32> to vector<4x1xf32>
    %198 = vector.broadcast %197 : vector<4x1xf32> to vector<4x256xf32>
    %199 = arith.mulf %198, %195 : vector<4x256xf32>
    %200 = arith.addf %191, %199 : vector<4x256xf32>
    %cst_89 = arith.constant 0.000000e+00 : f32
    %201 = vector.broadcast %cst_89 : f32 to vector<4x15xf32>
    %202 = vector.extract_strided_slice %182 {offsets = [0, 0], sizes = [4, 241], strides = [1, 1]} : vector<4x256xf32> to vector<4x241xf32>
    %203 = tpu.concatenate %201, %202 in 1 : vector<4x15xf32>, vector<4x241xf32> -> vector<4x256xf32>
    %204 = arith.mulf %203, %5 : vector<4x256xf32>
    %c10 = arith.constant 10 : index
    %c0_90 = arith.constant 0 : index
    %c0_91 = arith.constant 0 : index
    %205 = vector.load %arg2[%c10, %c0_90, %c0_91] : memref<36x4x1xf32, #tpu.memory_space<vmem>>, vector<1x4x1xf32>
    %206 = vector.shape_cast %205 : vector<1x4x1xf32> to vector<4x1xf32>
    %207 = vector.broadcast %206 : vector<4x1xf32> to vector<4x256xf32>
    %208 = arith.mulf %207, %204 : vector<4x256xf32>
    %209 = arith.addf %200, %208 : vector<4x256xf32>
    %cst_92 = arith.constant 0.000000e+00 : f32
    %210 = vector.broadcast %cst_92 : f32 to vector<4x1xf32>
    %211 = vector.extract_strided_slice %182 {offsets = [0, 0], sizes = [4, 255], strides = [1, 1]} : vector<4x256xf32> to vector<4x255xf32>
    %212 = tpu.concatenate %210, %211 in 1 : vector<4x1xf32>, vector<4x255xf32> -> vector<4x256xf32>
    %213 = arith.mulf %212, %7 : vector<4x256xf32>
    %c14 = arith.constant 14 : index
    %c0_93 = arith.constant 0 : index
    %c0_94 = arith.constant 0 : index
    %214 = vector.load %arg2[%c14, %c0_93, %c0_94] : memref<36x4x1xf32, #tpu.memory_space<vmem>>, vector<1x4x1xf32>
    %215 = vector.shape_cast %214 : vector<1x4x1xf32> to vector<4x1xf32>
    %216 = vector.broadcast %215 : vector<4x1xf32> to vector<4x256xf32>
    %217 = arith.mulf %216, %213 : vector<4x256xf32>
    %218 = arith.addf %209, %217 : vector<4x256xf32>
    %c18 = arith.constant 18 : index
    %c0_95 = arith.constant 0 : index
    %c0_96 = arith.constant 0 : index
    %219 = vector.load %arg2[%c18, %c0_95, %c0_96] : memref<36x4x1xf32, #tpu.memory_space<vmem>>, vector<1x4x1xf32>
    %220 = vector.shape_cast %219 : vector<1x4x1xf32> to vector<4x1xf32>
    %221 = vector.broadcast %220 : vector<4x1xf32> to vector<4x256xf32>
    %222 = arith.mulf %221, %182 : vector<4x256xf32>
    %223 = arith.addf %218, %222 : vector<4x256xf32>
    %cst_97 = arith.constant 0.000000e+00 : f32
    %224 = vector.broadcast %cst_97 : f32 to vector<4x1xf32>
    %225 = vector.extract_strided_slice %182 {offsets = [0, 1], sizes = [4, 255], strides = [1, 1]} : vector<4x256xf32> to vector<4x255xf32>
    %226 = tpu.concatenate %225, %224 in 1 : vector<4x255xf32>, vector<4x1xf32> -> vector<4x256xf32>
    %227 = arith.mulf %226, %9 : vector<4x256xf32>
    %c22 = arith.constant 22 : index
    %c0_98 = arith.constant 0 : index
    %c0_99 = arith.constant 0 : index
    %228 = vector.load %arg2[%c22, %c0_98, %c0_99] : memref<36x4x1xf32, #tpu.memory_space<vmem>>, vector<1x4x1xf32>
    %229 = vector.shape_cast %228 : vector<1x4x1xf32> to vector<4x1xf32>
    %230 = vector.broadcast %229 : vector<4x1xf32> to vector<4x256xf32>
    %231 = arith.mulf %230, %227 : vector<4x256xf32>
    %232 = arith.addf %223, %231 : vector<4x256xf32>
    %cst_100 = arith.constant 0.000000e+00 : f32
    %233 = vector.broadcast %cst_100 : f32 to vector<4x15xf32>
    %234 = vector.extract_strided_slice %182 {offsets = [0, 15], sizes = [4, 241], strides = [1, 1]} : vector<4x256xf32> to vector<4x241xf32>
    %235 = tpu.concatenate %234, %233 in 1 : vector<4x241xf32>, vector<4x15xf32> -> vector<4x256xf32>
    %236 = arith.mulf %235, %11 : vector<4x256xf32>
    %c26 = arith.constant 26 : index
    %c0_101 = arith.constant 0 : index
    %c0_102 = arith.constant 0 : index
    %237 = vector.load %arg2[%c26, %c0_101, %c0_102] : memref<36x4x1xf32, #tpu.memory_space<vmem>>, vector<1x4x1xf32>
    %238 = vector.shape_cast %237 : vector<1x4x1xf32> to vector<4x1xf32>
    %239 = vector.broadcast %238 : vector<4x1xf32> to vector<4x256xf32>
    %240 = arith.mulf %239, %236 : vector<4x256xf32>
    %241 = arith.addf %232, %240 : vector<4x256xf32>
    %cst_103 = arith.constant 0.000000e+00 : f32
    %242 = vector.broadcast %cst_103 : f32 to vector<4x16xf32>
    %243 = vector.extract_strided_slice %182 {offsets = [0, 16], sizes = [4, 240], strides = [1, 1]} : vector<4x256xf32> to vector<4x240xf32>
    %244 = tpu.concatenate %243, %242 in 1 : vector<4x240xf32>, vector<4x16xf32> -> vector<4x256xf32>
    %245 = arith.mulf %244, %13 : vector<4x256xf32>
    %c30 = arith.constant 30 : index
    %c0_104 = arith.constant 0 : index
    %c0_105 = arith.constant 0 : index
    %246 = vector.load %arg2[%c30, %c0_104, %c0_105] : memref<36x4x1xf32, #tpu.memory_space<vmem>>, vector<1x4x1xf32>
    %247 = vector.shape_cast %246 : vector<1x4x1xf32> to vector<4x1xf32>
    %248 = vector.broadcast %247 : vector<4x1xf32> to vector<4x256xf32>
    %249 = arith.mulf %248, %245 : vector<4x256xf32>
    %250 = arith.addf %241, %249 : vector<4x256xf32>
    %cst_106 = arith.constant 0.000000e+00 : f32
    %251 = vector.broadcast %cst_106 : f32 to vector<4x17xf32>
    %252 = vector.extract_strided_slice %182 {offsets = [0, 17], sizes = [4, 239], strides = [1, 1]} : vector<4x256xf32> to vector<4x239xf32>
    %253 = tpu.concatenate %252, %251 in 1 : vector<4x239xf32>, vector<4x17xf32> -> vector<4x256xf32>
    %254 = arith.mulf %253, %15 : vector<4x256xf32>
    %c34 = arith.constant 34 : index
    %c0_107 = arith.constant 0 : index
    %c0_108 = arith.constant 0 : index
    %255 = vector.load %arg2[%c34, %c0_107, %c0_108] : memref<36x4x1xf32, #tpu.memory_space<vmem>>, vector<1x4x1xf32>
    %256 = vector.shape_cast %255 : vector<1x4x1xf32> to vector<4x1xf32>
    %257 = vector.broadcast %256 : vector<4x1xf32> to vector<4x256xf32>
    %258 = arith.mulf %257, %254 : vector<4x256xf32>
    %259 = arith.addf %250, %258 : vector<4x256xf32>
    %c0_109 = arith.constant 0 : index
    %c3_110 = arith.constant 3 : index
    %c0_111 = arith.constant 0 : index
    %260 = vector.load %arg1[%c0_109, %c3_110, %c0_111] : memref<1x4x256xf32, #tpu.memory_space<vmem>>, vector<1x1x256xf32>
    %261 = vector.shape_cast %260 : vector<1x1x256xf32> to vector<1x256xf32>
    %262 = vector.shape_cast %261 : vector<1x256xf32> to vector<1x256xf32>
    %263 = vector.broadcast %262 : vector<1x256xf32> to vector<4x256xf32>
    %cst_112 = arith.constant 0.000000e+00 : f32
    %264 = vector.broadcast %cst_112 : f32 to vector<4x17xf32>
    %265 = vector.extract_strided_slice %263 {offsets = [0, 0], sizes = [4, 239], strides = [1, 1]} : vector<4x256xf32> to vector<4x239xf32>
    %266 = tpu.concatenate %264, %265 in 1 : vector<4x17xf32>, vector<4x239xf32> -> vector<4x256xf32>
    %267 = arith.mulf %266, %1 : vector<4x256xf32>
    %c3_113 = arith.constant 3 : index
    %c0_114 = arith.constant 0 : index
    %c0_115 = arith.constant 0 : index
    %268 = vector.load %arg2[%c3_113, %c0_114, %c0_115] : memref<36x4x1xf32, #tpu.memory_space<vmem>>, vector<1x4x1xf32>
    %269 = vector.shape_cast %268 : vector<1x4x1xf32> to vector<4x1xf32>
    %270 = vector.broadcast %269 : vector<4x1xf32> to vector<4x256xf32>
    %271 = arith.mulf %270, %267 : vector<4x256xf32>
    %272 = arith.addf %259, %271 : vector<4x256xf32>
    %cst_116 = arith.constant 0.000000e+00 : f32
    %273 = vector.broadcast %cst_116 : f32 to vector<4x16xf32>
    %274 = vector.extract_strided_slice %263 {offsets = [0, 0], sizes = [4, 240], strides = [1, 1]} : vector<4x256xf32> to vector<4x240xf32>
    %275 = tpu.concatenate %273, %274 in 1 : vector<4x16xf32>, vector<4x240xf32> -> vector<4x256xf32>
    %276 = arith.mulf %275, %3 : vector<4x256xf32>
    %c7_117 = arith.constant 7 : index
    %c0_118 = arith.constant 0 : index
    %c0_119 = arith.constant 0 : index
    %277 = vector.load %arg2[%c7_117, %c0_118, %c0_119] : memref<36x4x1xf32, #tpu.memory_space<vmem>>, vector<1x4x1xf32>
    %278 = vector.shape_cast %277 : vector<1x4x1xf32> to vector<4x1xf32>
    %279 = vector.broadcast %278 : vector<4x1xf32> to vector<4x256xf32>
    %280 = arith.mulf %279, %276 : vector<4x256xf32>
    %281 = arith.addf %272, %280 : vector<4x256xf32>
    %cst_120 = arith.constant 0.000000e+00 : f32
    %282 = vector.broadcast %cst_120 : f32 to vector<4x15xf32>
    %283 = vector.extract_strided_slice %263 {offsets = [0, 0], sizes = [4, 241], strides = [1, 1]} : vector<4x256xf32> to vector<4x241xf32>
    %284 = tpu.concatenate %282, %283 in 1 : vector<4x15xf32>, vector<4x241xf32> -> vector<4x256xf32>
    %285 = arith.mulf %284, %5 : vector<4x256xf32>
    %c11 = arith.constant 11 : index
    %c0_121 = arith.constant 0 : index
    %c0_122 = arith.constant 0 : index
    %286 = vector.load %arg2[%c11, %c0_121, %c0_122] : memref<36x4x1xf32, #tpu.memory_space<vmem>>, vector<1x4x1xf32>
    %287 = vector.shape_cast %286 : vector<1x4x1xf32> to vector<4x1xf32>
    %288 = vector.broadcast %287 : vector<4x1xf32> to vector<4x256xf32>
    %289 = arith.mulf %288, %285 : vector<4x256xf32>
    %290 = arith.addf %281, %289 : vector<4x256xf32>
    %cst_123 = arith.constant 0.000000e+00 : f32
    %291 = vector.broadcast %cst_123 : f32 to vector<4x1xf32>
    %292 = vector.extract_strided_slice %263 {offsets = [0, 0], sizes = [4, 255], strides = [1, 1]} : vector<4x256xf32> to vector<4x255xf32>
    %293 = tpu.concatenate %291, %292 in 1 : vector<4x1xf32>, vector<4x255xf32> -> vector<4x256xf32>
    %294 = arith.mulf %293, %7 : vector<4x256xf32>
    %c15 = arith.constant 15 : index
    %c0_124 = arith.constant 0 : index
    %c0_125 = arith.constant 0 : index
    %295 = vector.load %arg2[%c15, %c0_124, %c0_125] : memref<36x4x1xf32, #tpu.memory_space<vmem>>, vector<1x4x1xf32>
    %296 = vector.shape_cast %295 : vector<1x4x1xf32> to vector<4x1xf32>
    %297 = vector.broadcast %296 : vector<4x1xf32> to vector<4x256xf32>
    %298 = arith.mulf %297, %294 : vector<4x256xf32>
    %299 = arith.addf %290, %298 : vector<4x256xf32>
    %c19 = arith.constant 19 : index
    %c0_126 = arith.constant 0 : index
    %c0_127 = arith.constant 0 : index
    %300 = vector.load %arg2[%c19, %c0_126, %c0_127] : memref<36x4x1xf32, #tpu.memory_space<vmem>>, vector<1x4x1xf32>
    %301 = vector.shape_cast %300 : vector<1x4x1xf32> to vector<4x1xf32>
    %302 = vector.broadcast %301 : vector<4x1xf32> to vector<4x256xf32>
    %303 = arith.mulf %302, %263 : vector<4x256xf32>
    %304 = arith.addf %299, %303 : vector<4x256xf32>
    %cst_128 = arith.constant 0.000000e+00 : f32
    %305 = vector.broadcast %cst_128 : f32 to vector<4x1xf32>
    %306 = vector.extract_strided_slice %263 {offsets = [0, 1], sizes = [4, 255], strides = [1, 1]} : vector<4x256xf32> to vector<4x255xf32>
    %307 = tpu.concatenate %306, %305 in 1 : vector<4x255xf32>, vector<4x1xf32> -> vector<4x256xf32>
    %308 = arith.mulf %307, %9 : vector<4x256xf32>
    %c23 = arith.constant 23 : index
    %c0_129 = arith.constant 0 : index
    %c0_130 = arith.constant 0 : index
    %309 = vector.load %arg2[%c23, %c0_129, %c0_130] : memref<36x4x1xf32, #tpu.memory_space<vmem>>, vector<1x4x1xf32>
    %310 = vector.shape_cast %309 : vector<1x4x1xf32> to vector<4x1xf32>
    %311 = vector.broadcast %310 : vector<4x1xf32> to vector<4x256xf32>
    %312 = arith.mulf %311, %308 : vector<4x256xf32>
    %313 = arith.addf %304, %312 : vector<4x256xf32>
    %cst_131 = arith.constant 0.000000e+00 : f32
    %314 = vector.broadcast %cst_131 : f32 to vector<4x15xf32>
    %315 = vector.extract_strided_slice %263 {offsets = [0, 15], sizes = [4, 241], strides = [1, 1]} : vector<4x256xf32> to vector<4x241xf32>
    %316 = tpu.concatenate %315, %314 in 1 : vector<4x241xf32>, vector<4x15xf32> -> vector<4x256xf32>
    %317 = arith.mulf %316, %11 : vector<4x256xf32>
    %c27 = arith.constant 27 : index
    %c0_132 = arith.constant 0 : index
    %c0_133 = arith.constant 0 : index
    %318 = vector.load %arg2[%c27, %c0_132, %c0_133] : memref<36x4x1xf32, #tpu.memory_space<vmem>>, vector<1x4x1xf32>
    %319 = vector.shape_cast %318 : vector<1x4x1xf32> to vector<4x1xf32>
    %320 = vector.broadcast %319 : vector<4x1xf32> to vector<4x256xf32>
    %321 = arith.mulf %320, %317 : vector<4x256xf32>
    %322 = arith.addf %313, %321 : vector<4x256xf32>
    %cst_134 = arith.constant 0.000000e+00 : f32
    %323 = vector.broadcast %cst_134 : f32 to vector<4x16xf32>
    %324 = vector.extract_strided_slice %263 {offsets = [0, 16], sizes = [4, 240], strides = [1, 1]} : vector<4x256xf32> to vector<4x240xf32>
    %325 = tpu.concatenate %324, %323 in 1 : vector<4x240xf32>, vector<4x16xf32> -> vector<4x256xf32>
    %326 = arith.mulf %325, %13 : vector<4x256xf32>
    %c31 = arith.constant 31 : index
    %c0_135 = arith.constant 0 : index
    %c0_136 = arith.constant 0 : index
    %327 = vector.load %arg2[%c31, %c0_135, %c0_136] : memref<36x4x1xf32, #tpu.memory_space<vmem>>, vector<1x4x1xf32>
    %328 = vector.shape_cast %327 : vector<1x4x1xf32> to vector<4x1xf32>
    %329 = vector.broadcast %328 : vector<4x1xf32> to vector<4x256xf32>
    %330 = arith.mulf %329, %326 : vector<4x256xf32>
    %331 = arith.addf %322, %330 : vector<4x256xf32>
    %cst_137 = arith.constant 0.000000e+00 : f32
    %332 = vector.broadcast %cst_137 : f32 to vector<4x17xf32>
    %333 = vector.extract_strided_slice %263 {offsets = [0, 17], sizes = [4, 239], strides = [1, 1]} : vector<4x256xf32> to vector<4x239xf32>
    %334 = tpu.concatenate %333, %332 in 1 : vector<4x239xf32>, vector<4x17xf32> -> vector<4x256xf32>
    %335 = arith.mulf %334, %15 : vector<4x256xf32>
    %c35 = arith.constant 35 : index
    %c0_138 = arith.constant 0 : index
    %c0_139 = arith.constant 0 : index
    %336 = vector.load %arg2[%c35, %c0_138, %c0_139] : memref<36x4x1xf32, #tpu.memory_space<vmem>>, vector<1x4x1xf32>
    %337 = vector.shape_cast %336 : vector<1x4x1xf32> to vector<4x1xf32>
    %338 = vector.broadcast %337 : vector<4x1xf32> to vector<4x256xf32>
    %339 = arith.mulf %338, %335 : vector<4x256xf32>
    %340 = arith.addf %331, %339 : vector<4x256xf32>
    %c0_140 = arith.constant 0 : index
    %c0_141 = arith.constant 0 : index
    %341 = vector.load %arg3[%c0_140, %c0_141] : memref<4x1xf32, #tpu.memory_space<vmem>>, vector<4x1xf32>
    %342 = vector.broadcast %341 : vector<4x1xf32> to vector<4x256xf32>
    %343 = arith.addf %340, %342 : vector<4x256xf32>
    %cst_142 = arith.constant 0.000000e+00 : f32
    %344 = vector.broadcast %cst_142 : f32 to vector<4x256xf32>
    %345 = arith.maximumf %343, %344 : vector<4x256xf32>
    %c0_143 = arith.constant 0 : index
    %c0_144 = arith.constant 0 : index
    %346 = vector.load %arg8[%c0_143, %c0_144] : memref<4x256xf32, #tpu.memory_space<vmem>>, vector<4x256xf32>
    tpu.vector_store %arg8[%c0_143, %c0_144], %345 {strides = array<i32>} : memref<4x256xf32, #tpu.memory_space<vmem>>, vector<4x256xf32>,
    %cst_145 = arith.constant 0.000000e+00 : f32
    %347 = vector.broadcast %cst_145 : f32 to vector<4x256xf32>
    %c0_146 = arith.constant 0 : index
    %c0_147 = arith.constant 0 : index
    %348 = vector.load %arg8[%c0_146, %c0_147] : memref<4x256xf32, #tpu.memory_space<vmem>>, vector<1x256xf32>
    %349 = vector.shape_cast %348 : vector<1x256xf32> to vector<1x256xf32>
    %350 = vector.broadcast %349 : vector<1x256xf32> to vector<4x256xf32>
    %cst_148 = arith.constant 0.000000e+00 : f32
    %351 = vector.broadcast %cst_148 : f32 to vector<4x17xf32>
    %352 = vector.extract_strided_slice %350 {offsets = [0, 0], sizes = [4, 239], strides = [1, 1]} : vector<4x256xf32> to vector<4x239xf32>
    %353 = tpu.concatenate %351, %352 in 1 : vector<4x17xf32>, vector<4x239xf32> -> vector<4x256xf32>
    %354 = arith.mulf %353, %1 : vector<4x256xf32>
    %c0_149 = arith.constant 0 : index
    %c0_150 = arith.constant 0 : index
    %c0_151 = arith.constant 0 : index
    %355 = vector.load %arg4[%c0_149, %c0_150, %c0_151] : memref<36x4x1xf32, #tpu.memory_space<vmem>>, vector<1x4x1xf32>
    %356 = vector.shape_cast %355 : vector<1x4x1xf32> to vector<4x1xf32>
    %357 = vector.broadcast %356 : vector<4x1xf32> to vector<4x256xf32>
    %358 = arith.mulf %357, %354 : vector<4x256xf32>
    %359 = arith.addf %347, %358 : vector<4x256xf32>
    %cst_152 = arith.constant 0.000000e+00 : f32
    %360 = vector.broadcast %cst_152 : f32 to vector<4x16xf32>
    %361 = vector.extract_strided_slice %350 {offsets = [0, 0], sizes = [4, 240], strides = [1, 1]} : vector<4x256xf32> to vector<4x240xf32>
    %362 = tpu.concatenate %360, %361 in 1 : vector<4x16xf32>, vector<4x240xf32> -> vector<4x256xf32>
    %363 = arith.mulf %362, %3 : vector<4x256xf32>
    %c4_153 = arith.constant 4 : index
    %c0_154 = arith.constant 0 : index
    %c0_155 = arith.constant 0 : index
    %364 = vector.load %arg4[%c4_153, %c0_154, %c0_155] : memref<36x4x1xf32, #tpu.memory_space<vmem>>, vector<1x4x1xf32>
    %365 = vector.shape_cast %364 : vector<1x4x1xf32> to vector<4x1xf32>
    %366 = vector.broadcast %365 : vector<4x1xf32> to vector<4x256xf32>
    %367 = arith.mulf %366, %363 : vector<4x256xf32>
    %368 = arith.addf %359, %367 : vector<4x256xf32>
    %cst_156 = arith.constant 0.000000e+00 : f32
    %369 = vector.broadcast %cst_156 : f32 to vector<4x15xf32>
    %370 = vector.extract_strided_slice %350 {offsets = [0, 0], sizes = [4, 241], strides = [1, 1]} : vector<4x256xf32> to vector<4x241xf32>
    %371 = tpu.concatenate %369, %370 in 1 : vector<4x15xf32>, vector<4x241xf32> -> vector<4x256xf32>
    %372 = arith.mulf %371, %5 : vector<4x256xf32>
    %c8_157 = arith.constant 8 : index
    %c0_158 = arith.constant 0 : index
    %c0_159 = arith.constant 0 : index
    %373 = vector.load %arg4[%c8_157, %c0_158, %c0_159] : memref<36x4x1xf32, #tpu.memory_space<vmem>>, vector<1x4x1xf32>
    %374 = vector.shape_cast %373 : vector<1x4x1xf32> to vector<4x1xf32>
    %375 = vector.broadcast %374 : vector<4x1xf32> to vector<4x256xf32>
    %376 = arith.mulf %375, %372 : vector<4x256xf32>
    %377 = arith.addf %368, %376 : vector<4x256xf32>
    %cst_160 = arith.constant 0.000000e+00 : f32
    %378 = vector.broadcast %cst_160 : f32 to vector<4x1xf32>
    %379 = vector.extract_strided_slice %350 {offsets = [0, 0], sizes = [4, 255], strides = [1, 1]} : vector<4x256xf32> to vector<4x255xf32>
    %380 = tpu.concatenate %378, %379 in 1 : vector<4x1xf32>, vector<4x255xf32> -> vector<4x256xf32>
    %381 = arith.mulf %380, %7 : vector<4x256xf32>
    %c12_161 = arith.constant 12 : index
    %c0_162 = arith.constant 0 : index
    %c0_163 = arith.constant 0 : index
    %382 = vector.load %arg4[%c12_161, %c0_162, %c0_163] : memref<36x4x1xf32, #tpu.memory_space<vmem>>, vector<1x4x1xf32>
    %383 = vector.shape_cast %382 : vector<1x4x1xf32> to vector<4x1xf32>
    %384 = vector.broadcast %383 : vector<4x1xf32> to vector<4x256xf32>
    %385 = arith.mulf %384, %381 : vector<4x256xf32>
    %386 = arith.addf %377, %385 : vector<4x256xf32>
    %c16_164 = arith.constant 16 : index
    %c0_165 = arith.constant 0 : index
    %c0_166 = arith.constant 0 : index
    %387 = vector.load %arg4[%c16_164, %c0_165, %c0_166] : memref<36x4x1xf32, #tpu.memory_space<vmem>>, vector<1x4x1xf32>
    %388 = vector.shape_cast %387 : vector<1x4x1xf32> to vector<4x1xf32>
    %389 = vector.broadcast %388 : vector<4x1xf32> to vector<4x256xf32>
    %390 = arith.mulf %389, %350 : vector<4x256xf32>
    %391 = arith.addf %386, %390 : vector<4x256xf32>
    %cst_167 = arith.constant 0.000000e+00 : f32
    %392 = vector.broadcast %cst_167 : f32 to vector<4x1xf32>
    %393 = vector.extract_strided_slice %350 {offsets = [0, 1], sizes = [4, 255], strides = [1, 1]} : vector<4x256xf32> to vector<4x255xf32>
    %394 = tpu.concatenate %393, %392 in 1 : vector<4x255xf32>, vector<4x1xf32> -> vector<4x256xf32>
    %395 = arith.mulf %394, %9 : vector<4x256xf32>
    %c20_168 = arith.constant 20 : index
    %c0_169 = arith.constant 0 : index
    %c0_170 = arith.constant 0 : index
    %396 = vector.load %arg4[%c20_168, %c0_169, %c0_170] : memref<36x4x1xf32, #tpu.memory_space<vmem>>, vector<1x4x1xf32>
    %397 = vector.shape_cast %396 : vector<1x4x1xf32> to vector<4x1xf32>
    %398 = vector.broadcast %397 : vector<4x1xf32> to vector<4x256xf32>
    %399 = arith.mulf %398, %395 : vector<4x256xf32>
    %400 = arith.addf %391, %399 : vector<4x256xf32>
    %cst_171 = arith.constant 0.000000e+00 : f32
    %401 = vector.broadcast %cst_171 : f32 to vector<4x15xf32>
    %402 = vector.extract_strided_slice %350 {offsets = [0, 15], sizes = [4, 241], strides = [1, 1]} : vector<4x256xf32> to vector<4x241xf32>
    %403 = tpu.concatenate %402, %401 in 1 : vector<4x241xf32>, vector<4x15xf32> -> vector<4x256xf32>
    %404 = arith.mulf %403, %11 : vector<4x256xf32>
    %c24_172 = arith.constant 24 : index
    %c0_173 = arith.constant 0 : index
    %c0_174 = arith.constant 0 : index
    %405 = vector.load %arg4[%c24_172, %c0_173, %c0_174] : memref<36x4x1xf32, #tpu.memory_space<vmem>>, vector<1x4x1xf32>
    %406 = vector.shape_cast %405 : vector<1x4x1xf32> to vector<4x1xf32>
    %407 = vector.broadcast %406 : vector<4x1xf32> to vector<4x256xf32>
    %408 = arith.mulf %407, %404 : vector<4x256xf32>
    %409 = arith.addf %400, %408 : vector<4x256xf32>
    %cst_175 = arith.constant 0.000000e+00 : f32
    %410 = vector.broadcast %cst_175 : f32 to vector<4x16xf32>
    %411 = vector.extract_strided_slice %350 {offsets = [0, 16], sizes = [4, 240], strides = [1, 1]} : vector<4x256xf32> to vector<4x240xf32>
    %412 = tpu.concatenate %411, %410 in 1 : vector<4x240xf32>, vector<4x16xf32> -> vector<4x256xf32>
    %413 = arith.mulf %412, %13 : vector<4x256xf32>
    %c28_176 = arith.constant 28 : index
    %c0_177 = arith.constant 0 : index
    %c0_178 = arith.constant 0 : index
    %414 = vector.load %arg4[%c28_176, %c0_177, %c0_178] : memref<36x4x1xf32, #tpu.memory_space<vmem>>, vector<1x4x1xf32>
    %415 = vector.shape_cast %414 : vector<1x4x1xf32> to vector<4x1xf32>
    %416 = vector.broadcast %415 : vector<4x1xf32> to vector<4x256xf32>
    %417 = arith.mulf %416, %413 : vector<4x256xf32>
    %418 = arith.addf %409, %417 : vector<4x256xf32>
    %cst_179 = arith.constant 0.000000e+00 : f32
    %419 = vector.broadcast %cst_179 : f32 to vector<4x17xf32>
    %420 = vector.extract_strided_slice %350 {offsets = [0, 17], sizes = [4, 239], strides = [1, 1]} : vector<4x256xf32> to vector<4x239xf32>
    %421 = tpu.concatenate %420, %419 in 1 : vector<4x239xf32>, vector<4x17xf32> -> vector<4x256xf32>
    %422 = arith.mulf %421, %15 : vector<4x256xf32>
    %c32_180 = arith.constant 32 : index
    %c0_181 = arith.constant 0 : index
    %c0_182 = arith.constant 0 : index
    %423 = vector.load %arg4[%c32_180, %c0_181, %c0_182] : memref<36x4x1xf32, #tpu.memory_space<vmem>>, vector<1x4x1xf32>
    %424 = vector.shape_cast %423 : vector<1x4x1xf32> to vector<4x1xf32>
    %425 = vector.broadcast %424 : vector<4x1xf32> to vector<4x256xf32>
    %426 = arith.mulf %425, %422 : vector<4x256xf32>
    %427 = arith.addf %418, %426 : vector<4x256xf32>
    %c1_183 = arith.constant 1 : index
    %c0_184 = arith.constant 0 : index
    %428 = vector.load %arg8[%c1_183, %c0_184] : memref<4x256xf32, #tpu.memory_space<vmem>>, vector<1x256xf32>
    %429 = vector.shape_cast %428 : vector<1x256xf32> to vector<1x256xf32>
    %430 = vector.broadcast %429 : vector<1x256xf32> to vector<4x256xf32>
    %cst_185 = arith.constant 0.000000e+00 : f32
    %431 = vector.broadcast %cst_185 : f32 to vector<4x17xf32>
    %432 = vector.extract_strided_slice %430 {offsets = [0, 0], sizes = [4, 239], strides = [1, 1]} : vector<4x256xf32> to vector<4x239xf32>
    %433 = tpu.concatenate %431, %432 in 1 : vector<4x17xf32>, vector<4x239xf32> -> vector<4x256xf32>
    %434 = arith.mulf %433, %1 : vector<4x256xf32>
    %c1_186 = arith.constant 1 : index
    %c0_187 = arith.constant 0 : index
    %c0_188 = arith.constant 0 : index
    %435 = vector.load %arg4[%c1_186, %c0_187, %c0_188] : memref<36x4x1xf32, #tpu.memory_space<vmem>>, vector<1x4x1xf32>
    %436 = vector.shape_cast %435 : vector<1x4x1xf32> to vector<4x1xf32>
    %437 = vector.broadcast %436 : vector<4x1xf32> to vector<4x256xf32>
    %438 = arith.mulf %437, %434 : vector<4x256xf32>
    %439 = arith.addf %427, %438 : vector<4x256xf32>
    %cst_189 = arith.constant 0.000000e+00 : f32
    %440 = vector.broadcast %cst_189 : f32 to vector<4x16xf32>
    %441 = vector.extract_strided_slice %430 {offsets = [0, 0], sizes = [4, 240], strides = [1, 1]} : vector<4x256xf32> to vector<4x240xf32>
    %442 = tpu.concatenate %440, %441 in 1 : vector<4x16xf32>, vector<4x240xf32> -> vector<4x256xf32>
    %443 = arith.mulf %442, %3 : vector<4x256xf32>
    %c5_190 = arith.constant 5 : index
    %c0_191 = arith.constant 0 : index
    %c0_192 = arith.constant 0 : index
    %444 = vector.load %arg4[%c5_190, %c0_191, %c0_192] : memref<36x4x1xf32, #tpu.memory_space<vmem>>, vector<1x4x1xf32>
    %445 = vector.shape_cast %444 : vector<1x4x1xf32> to vector<4x1xf32>
    %446 = vector.broadcast %445 : vector<4x1xf32> to vector<4x256xf32>
    %447 = arith.mulf %446, %443 : vector<4x256xf32>
    %448 = arith.addf %439, %447 : vector<4x256xf32>
    %cst_193 = arith.constant 0.000000e+00 : f32
    %449 = vector.broadcast %cst_193 : f32 to vector<4x15xf32>
    %450 = vector.extract_strided_slice %430 {offsets = [0, 0], sizes = [4, 241], strides = [1, 1]} : vector<4x256xf32> to vector<4x241xf32>
    %451 = tpu.concatenate %449, %450 in 1 : vector<4x15xf32>, vector<4x241xf32> -> vector<4x256xf32>
    %452 = arith.mulf %451, %5 : vector<4x256xf32>
    %c9_194 = arith.constant 9 : index
    %c0_195 = arith.constant 0 : index
    %c0_196 = arith.constant 0 : index
    %453 = vector.load %arg4[%c9_194, %c0_195, %c0_196] : memref<36x4x1xf32, #tpu.memory_space<vmem>>, vector<1x4x1xf32>
    %454 = vector.shape_cast %453 : vector<1x4x1xf32> to vector<4x1xf32>
    %455 = vector.broadcast %454 : vector<4x1xf32> to vector<4x256xf32>
    %456 = arith.mulf %455, %452 : vector<4x256xf32>
    %457 = arith.addf %448, %456 : vector<4x256xf32>
    %cst_197 = arith.constant 0.000000e+00 : f32
    %458 = vector.broadcast %cst_197 : f32 to vector<4x1xf32>
    %459 = vector.extract_strided_slice %430 {offsets = [0, 0], sizes = [4, 255], strides = [1, 1]} : vector<4x256xf32> to vector<4x255xf32>
    %460 = tpu.concatenate %458, %459 in 1 : vector<4x1xf32>, vector<4x255xf32> -> vector<4x256xf32>
    %461 = arith.mulf %460, %7 : vector<4x256xf32>
    %c13_198 = arith.constant 13 : index
    %c0_199 = arith.constant 0 : index
    %c0_200 = arith.constant 0 : index
    %462 = vector.load %arg4[%c13_198, %c0_199, %c0_200] : memref<36x4x1xf32, #tpu.memory_space<vmem>>, vector<1x4x1xf32>
    %463 = vector.shape_cast %462 : vector<1x4x1xf32> to vector<4x1xf32>
    %464 = vector.broadcast %463 : vector<4x1xf32> to vector<4x256xf32>
    %465 = arith.mulf %464, %461 : vector<4x256xf32>
    %466 = arith.addf %457, %465 : vector<4x256xf32>
    %c17_201 = arith.constant 17 : index
    %c0_202 = arith.constant 0 : index
    %c0_203 = arith.constant 0 : index
    %467 = vector.load %arg4[%c17_201, %c0_202, %c0_203] : memref<36x4x1xf32, #tpu.memory_space<vmem>>, vector<1x4x1xf32>
    %468 = vector.shape_cast %467 : vector<1x4x1xf32> to vector<4x1xf32>
    %469 = vector.broadcast %468 : vector<4x1xf32> to vector<4x256xf32>
    %470 = arith.mulf %469, %430 : vector<4x256xf32>
    %471 = arith.addf %466, %470 : vector<4x256xf32>
    %cst_204 = arith.constant 0.000000e+00 : f32
    %472 = vector.broadcast %cst_204 : f32 to vector<4x1xf32>
    %473 = vector.extract_strided_slice %430 {offsets = [0, 1], sizes = [4, 255], strides = [1, 1]} : vector<4x256xf32> to vector<4x255xf32>
    %474 = tpu.concatenate %473, %472 in 1 : vector<4x255xf32>, vector<4x1xf32> -> vector<4x256xf32>
    %475 = arith.mulf %474, %9 : vector<4x256xf32>
    %c21_205 = arith.constant 21 : index
    %c0_206 = arith.constant 0 : index
    %c0_207 = arith.constant 0 : index
    %476 = vector.load %arg4[%c21_205, %c0_206, %c0_207] : memref<36x4x1xf32, #tpu.memory_space<vmem>>, vector<1x4x1xf32>
    %477 = vector.shape_cast %476 : vector<1x4x1xf32> to vector<4x1xf32>
    %478 = vector.broadcast %477 : vector<4x1xf32> to vector<4x256xf32>
    %479 = arith.mulf %478, %475 : vector<4x256xf32>
    %480 = arith.addf %471, %479 : vector<4x256xf32>
    %cst_208 = arith.constant 0.000000e+00 : f32
    %481 = vector.broadcast %cst_208 : f32 to vector<4x15xf32>
    %482 = vector.extract_strided_slice %430 {offsets = [0, 15], sizes = [4, 241], strides = [1, 1]} : vector<4x256xf32> to vector<4x241xf32>
    %483 = tpu.concatenate %482, %481 in 1 : vector<4x241xf32>, vector<4x15xf32> -> vector<4x256xf32>
    %484 = arith.mulf %483, %11 : vector<4x256xf32>
    %c25_209 = arith.constant 25 : index
    %c0_210 = arith.constant 0 : index
    %c0_211 = arith.constant 0 : index
    %485 = vector.load %arg4[%c25_209, %c0_210, %c0_211] : memref<36x4x1xf32, #tpu.memory_space<vmem>>, vector<1x4x1xf32>
    %486 = vector.shape_cast %485 : vector<1x4x1xf32> to vector<4x1xf32>
    %487 = vector.broadcast %486 : vector<4x1xf32> to vector<4x256xf32>
    %488 = arith.mulf %487, %484 : vector<4x256xf32>
    %489 = arith.addf %480, %488 : vector<4x256xf32>
    %cst_212 = arith.constant 0.000000e+00 : f32
    %490 = vector.broadcast %cst_212 : f32 to vector<4x16xf32>
    %491 = vector.extract_strided_slice %430 {offsets = [0, 16], sizes = [4, 240], strides = [1, 1]} : vector<4x256xf32> to vector<4x240xf32>
    %492 = tpu.concatenate %491, %490 in 1 : vector<4x240xf32>, vector<4x16xf32> -> vector<4x256xf32>
    %493 = arith.mulf %492, %13 : vector<4x256xf32>
    %c29_213 = arith.constant 29 : index
    %c0_214 = arith.constant 0 : index
    %c0_215 = arith.constant 0 : index
    %494 = vector.load %arg4[%c29_213, %c0_214, %c0_215] : memref<36x4x1xf32, #tpu.memory_space<vmem>>, vector<1x4x1xf32>
    %495 = vector.shape_cast %494 : vector<1x4x1xf32> to vector<4x1xf32>
    %496 = vector.broadcast %495 : vector<4x1xf32> to vector<4x256xf32>
    %497 = arith.mulf %496, %493 : vector<4x256xf32>
    %498 = arith.addf %489, %497 : vector<4x256xf32>
    %cst_216 = arith.constant 0.000000e+00 : f32
    %499 = vector.broadcast %cst_216 : f32 to vector<4x17xf32>
    %500 = vector.extract_strided_slice %430 {offsets = [0, 17], sizes = [4, 239], strides = [1, 1]} : vector<4x256xf32> to vector<4x239xf32>
    %501 = tpu.concatenate %500, %499 in 1 : vector<4x239xf32>, vector<4x17xf32> -> vector<4x256xf32>
    %502 = arith.mulf %501, %15 : vector<4x256xf32>
    %c33_217 = arith.constant 33 : index
    %c0_218 = arith.constant 0 : index
    %c0_219 = arith.constant 0 : index
    %503 = vector.load %arg4[%c33_217, %c0_218, %c0_219] : memref<36x4x1xf32, #tpu.memory_space<vmem>>, vector<1x4x1xf32>
    %504 = vector.shape_cast %503 : vector<1x4x1xf32> to vector<4x1xf32>
    %505 = vector.broadcast %504 : vector<4x1xf32> to vector<4x256xf32>
    %506 = arith.mulf %505, %502 : vector<4x256xf32>
    %507 = arith.addf %498, %506 : vector<4x256xf32>
    %c2_220 = arith.constant 2 : index
    %c0_221 = arith.constant 0 : index
    %508 = vector.load %arg8[%c2_220, %c0_221] : memref<4x256xf32, #tpu.memory_space<vmem>>, vector<1x256xf32>
    %509 = vector.shape_cast %508 : vector<1x256xf32> to vector<1x256xf32>
    %510 = vector.broadcast %509 : vector<1x256xf32> to vector<4x256xf32>
    %cst_222 = arith.constant 0.000000e+00 : f32
    %511 = vector.broadcast %cst_222 : f32 to vector<4x17xf32>
    %512 = vector.extract_strided_slice %510 {offsets = [0, 0], sizes = [4, 239], strides = [1, 1]} : vector<4x256xf32> to vector<4x239xf32>
    %513 = tpu.concatenate %511, %512 in 1 : vector<4x17xf32>, vector<4x239xf32> -> vector<4x256xf32>
    %514 = arith.mulf %513, %1 : vector<4x256xf32>
    %c2_223 = arith.constant 2 : index
    %c0_224 = arith.constant 0 : index
    %c0_225 = arith.constant 0 : index
    %515 = vector.load %arg4[%c2_223, %c0_224, %c0_225] : memref<36x4x1xf32, #tpu.memory_space<vmem>>, vector<1x4x1xf32>
    %516 = vector.shape_cast %515 : vector<1x4x1xf32> to vector<4x1xf32>
    %517 = vector.broadcast %516 : vector<4x1xf32> to vector<4x256xf32>
    %518 = arith.mulf %517, %514 : vector<4x256xf32>
    %519 = arith.addf %507, %518 : vector<4x256xf32>
    %cst_226 = arith.constant 0.000000e+00 : f32
    %520 = vector.broadcast %cst_226 : f32 to vector<4x16xf32>
    %521 = vector.extract_strided_slice %510 {offsets = [0, 0], sizes = [4, 240], strides = [1, 1]} : vector<4x256xf32> to vector<4x240xf32>
    %522 = tpu.concatenate %520, %521 in 1 : vector<4x16xf32>, vector<4x240xf32> -> vector<4x256xf32>
    %523 = arith.mulf %522, %3 : vector<4x256xf32>
    %c6_227 = arith.constant 6 : index
    %c0_228 = arith.constant 0 : index
    %c0_229 = arith.constant 0 : index
    %524 = vector.load %arg4[%c6_227, %c0_228, %c0_229] : memref<36x4x1xf32, #tpu.memory_space<vmem>>, vector<1x4x1xf32>
    %525 = vector.shape_cast %524 : vector<1x4x1xf32> to vector<4x1xf32>
    %526 = vector.broadcast %525 : vector<4x1xf32> to vector<4x256xf32>
    %527 = arith.mulf %526, %523 : vector<4x256xf32>
    %528 = arith.addf %519, %527 : vector<4x256xf32>
    %cst_230 = arith.constant 0.000000e+00 : f32
    %529 = vector.broadcast %cst_230 : f32 to vector<4x15xf32>
    %530 = vector.extract_strided_slice %510 {offsets = [0, 0], sizes = [4, 241], strides = [1, 1]} : vector<4x256xf32> to vector<4x241xf32>
    %531 = tpu.concatenate %529, %530 in 1 : vector<4x15xf32>, vector<4x241xf32> -> vector<4x256xf32>
    %532 = arith.mulf %531, %5 : vector<4x256xf32>
    %c10_231 = arith.constant 10 : index
    %c0_232 = arith.constant 0 : index
    %c0_233 = arith.constant 0 : index
    %533 = vector.load %arg4[%c10_231, %c0_232, %c0_233] : memref<36x4x1xf32, #tpu.memory_space<vmem>>, vector<1x4x1xf32>
    %534 = vector.shape_cast %533 : vector<1x4x1xf32> to vector<4x1xf32>
    %535 = vector.broadcast %534 : vector<4x1xf32> to vector<4x256xf32>
    %536 = arith.mulf %535, %532 : vector<4x256xf32>
    %537 = arith.addf %528, %536 : vector<4x256xf32>
    %cst_234 = arith.constant 0.000000e+00 : f32
    %538 = vector.broadcast %cst_234 : f32 to vector<4x1xf32>
    %539 = vector.extract_strided_slice %510 {offsets = [0, 0], sizes = [4, 255], strides = [1, 1]} : vector<4x256xf32> to vector<4x255xf32>
    %540 = tpu.concatenate %538, %539 in 1 : vector<4x1xf32>, vector<4x255xf32> -> vector<4x256xf32>
    %541 = arith.mulf %540, %7 : vector<4x256xf32>
    %c14_235 = arith.constant 14 : index
    %c0_236 = arith.constant 0 : index
    %c0_237 = arith.constant 0 : index
    %542 = vector.load %arg4[%c14_235, %c0_236, %c0_237] : memref<36x4x1xf32, #tpu.memory_space<vmem>>, vector<1x4x1xf32>
    %543 = vector.shape_cast %542 : vector<1x4x1xf32> to vector<4x1xf32>
    %544 = vector.broadcast %543 : vector<4x1xf32> to vector<4x256xf32>
    %545 = arith.mulf %544, %541 : vector<4x256xf32>
    %546 = arith.addf %537, %545 : vector<4x256xf32>
    %c18_238 = arith.constant 18 : index
    %c0_239 = arith.constant 0 : index
    %c0_240 = arith.constant 0 : index
    %547 = vector.load %arg4[%c18_238, %c0_239, %c0_240] : memref<36x4x1xf32, #tpu.memory_space<vmem>>, vector<1x4x1xf32>
    %548 = vector.shape_cast %547 : vector<1x4x1xf32> to vector<4x1xf32>
    %549 = vector.broadcast %548 : vector<4x1xf32> to vector<4x256xf32>
    %550 = arith.mulf %549, %510 : vector<4x256xf32>
    %551 = arith.addf %546, %550 : vector<4x256xf32>
    %cst_241 = arith.constant 0.000000e+00 : f32
    %552 = vector.broadcast %cst_241 : f32 to vector<4x1xf32>
    %553 = vector.extract_strided_slice %510 {offsets = [0, 1], sizes = [4, 255], strides = [1, 1]} : vector<4x256xf32> to vector<4x255xf32>
    %554 = tpu.concatenate %553, %552 in 1 : vector<4x255xf32>, vector<4x1xf32> -> vector<4x256xf32>
    %555 = arith.mulf %554, %9 : vector<4x256xf32>
    %c22_242 = arith.constant 22 : index
    %c0_243 = arith.constant 0 : index
    %c0_244 = arith.constant 0 : index
    %556 = vector.load %arg4[%c22_242, %c0_243, %c0_244] : memref<36x4x1xf32, #tpu.memory_space<vmem>>, vector<1x4x1xf32>
    %557 = vector.shape_cast %556 : vector<1x4x1xf32> to vector<4x1xf32>
    %558 = vector.broadcast %557 : vector<4x1xf32> to vector<4x256xf32>
    %559 = arith.mulf %558, %555 : vector<4x256xf32>
    %560 = arith.addf %551, %559 : vector<4x256xf32>
    %cst_245 = arith.constant 0.000000e+00 : f32
    %561 = vector.broadcast %cst_245 : f32 to vector<4x15xf32>
    %562 = vector.extract_strided_slice %510 {offsets = [0, 15], sizes = [4, 241], strides = [1, 1]} : vector<4x256xf32> to vector<4x241xf32>
    %563 = tpu.concatenate %562, %561 in 1 : vector<4x241xf32>, vector<4x15xf32> -> vector<4x256xf32>
    %564 = arith.mulf %563, %11 : vector<4x256xf32>
    %c26_246 = arith.constant 26 : index
    %c0_247 = arith.constant 0 : index
    %c0_248 = arith.constant 0 : index
    %565 = vector.load %arg4[%c26_246, %c0_247, %c0_248] : memref<36x4x1xf32, #tpu.memory_space<vmem>>, vector<1x4x1xf32>
    %566 = vector.shape_cast %565 : vector<1x4x1xf32> to vector<4x1xf32>
    %567 = vector.broadcast %566 : vector<4x1xf32> to vector<4x256xf32>
    %568 = arith.mulf %567, %564 : vector<4x256xf32>
    %569 = arith.addf %560, %568 : vector<4x256xf32>
    %cst_249 = arith.constant 0.000000e+00 : f32
    %570 = vector.broadcast %cst_249 : f32 to vector<4x16xf32>
    %571 = vector.extract_strided_slice %510 {offsets = [0, 16], sizes = [4, 240], strides = [1, 1]} : vector<4x256xf32> to vector<4x240xf32>
    %572 = tpu.concatenate %571, %570 in 1 : vector<4x240xf32>, vector<4x16xf32> -> vector<4x256xf32>
    %573 = arith.mulf %572, %13 : vector<4x256xf32>
    %c30_250 = arith.constant 30 : index
    %c0_251 = arith.constant 0 : index
    %c0_252 = arith.constant 0 : index
    %574 = vector.load %arg4[%c30_250, %c0_251, %c0_252] : memref<36x4x1xf32, #tpu.memory_space<vmem>>, vector<1x4x1xf32>
    %575 = vector.shape_cast %574 : vector<1x4x1xf32> to vector<4x1xf32>
    %576 = vector.broadcast %575 : vector<4x1xf32> to vector<4x256xf32>
    %577 = arith.mulf %576, %573 : vector<4x256xf32>
    %578 = arith.addf %569, %577 : vector<4x256xf32>
    %cst_253 = arith.constant 0.000000e+00 : f32
    %579 = vector.broadcast %cst_253 : f32 to vector<4x17xf32>
    %580 = vector.extract_strided_slice %510 {offsets = [0, 17], sizes = [4, 239], strides = [1, 1]} : vector<4x256xf32> to vector<4x239xf32>
    %581 = tpu.concatenate %580, %579 in 1 : vector<4x239xf32>, vector<4x17xf32> -> vector<4x256xf32>
    %582 = arith.mulf %581, %15 : vector<4x256xf32>
    %c34_254 = arith.constant 34 : index
    %c0_255 = arith.constant 0 : index
    %c0_256 = arith.constant 0 : index
    %583 = vector.load %arg4[%c34_254, %c0_255, %c0_256] : memref<36x4x1xf32, #tpu.memory_space<vmem>>, vector<1x4x1xf32>
    %584 = vector.shape_cast %583 : vector<1x4x1xf32> to vector<4x1xf32>
    %585 = vector.broadcast %584 : vector<4x1xf32> to vector<4x256xf32>
    %586 = arith.mulf %585, %582 : vector<4x256xf32>
    %587 = arith.addf %578, %586 : vector<4x256xf32>
    %c3_257 = arith.constant 3 : index
    %c0_258 = arith.constant 0 : index
    %588 = vector.load %arg8[%c3_257, %c0_258] : memref<4x256xf32, #tpu.memory_space<vmem>>, vector<1x256xf32>
    %589 = vector.shape_cast %588 : vector<1x256xf32> to vector<1x256xf32>
    %590 = vector.broadcast %589 : vector<1x256xf32> to vector<4x256xf32>
    %cst_259 = arith.constant 0.000000e+00 : f32
    %591 = vector.broadcast %cst_259 : f32 to vector<4x17xf32>
    %592 = vector.extract_strided_slice %590 {offsets = [0, 0], sizes = [4, 239], strides = [1, 1]} : vector<4x256xf32> to vector<4x239xf32>
    %593 = tpu.concatenate %591, %592 in 1 : vector<4x17xf32>, vector<4x239xf32> -> vector<4x256xf32>
    %594 = arith.mulf %593, %1 : vector<4x256xf32>
    %c3_260 = arith.constant 3 : index
    %c0_261 = arith.constant 0 : index
    %c0_262 = arith.constant 0 : index
    %595 = vector.load %arg4[%c3_260, %c0_261, %c0_262] : memref<36x4x1xf32, #tpu.memory_space<vmem>>, vector<1x4x1xf32>
    %596 = vector.shape_cast %595 : vector<1x4x1xf32> to vector<4x1xf32>
    %597 = vector.broadcast %596 : vector<4x1xf32> to vector<4x256xf32>
    %598 = arith.mulf %597, %594 : vector<4x256xf32>
    %599 = arith.addf %587, %598 : vector<4x256xf32>
    %cst_263 = arith.constant 0.000000e+00 : f32
    %600 = vector.broadcast %cst_263 : f32 to vector<4x16xf32>
    %601 = vector.extract_strided_slice %590 {offsets = [0, 0], sizes = [4, 240], strides = [1, 1]} : vector<4x256xf32> to vector<4x240xf32>
    %602 = tpu.concatenate %600, %601 in 1 : vector<4x16xf32>, vector<4x240xf32> -> vector<4x256xf32>
    %603 = arith.mulf %602, %3 : vector<4x256xf32>
    %c7_264 = arith.constant 7 : index
    %c0_265 = arith.constant 0 : index
    %c0_266 = arith.constant 0 : index
    %604 = vector.load %arg4[%c7_264, %c0_265, %c0_266] : memref<36x4x1xf32, #tpu.memory_space<vmem>>, vector<1x4x1xf32>
    %605 = vector.shape_cast %604 : vector<1x4x1xf32> to vector<4x1xf32>
    %606 = vector.broadcast %605 : vector<4x1xf32> to vector<4x256xf32>
    %607 = arith.mulf %606, %603 : vector<4x256xf32>
    %608 = arith.addf %599, %607 : vector<4x256xf32>
    %cst_267 = arith.constant 0.000000e+00 : f32
    %609 = vector.broadcast %cst_267 : f32 to vector<4x15xf32>
    %610 = vector.extract_strided_slice %590 {offsets = [0, 0], sizes = [4, 241], strides = [1, 1]} : vector<4x256xf32> to vector<4x241xf32>
    %611 = tpu.concatenate %609, %610 in 1 : vector<4x15xf32>, vector<4x241xf32> -> vector<4x256xf32>
    %612 = arith.mulf %611, %5 : vector<4x256xf32>
    %c11_268 = arith.constant 11 : index
    %c0_269 = arith.constant 0 : index
    %c0_270 = arith.constant 0 : index
    %613 = vector.load %arg4[%c11_268, %c0_269, %c0_270] : memref<36x4x1xf32, #tpu.memory_space<vmem>>, vector<1x4x1xf32>
    %614 = vector.shape_cast %613 : vector<1x4x1xf32> to vector<4x1xf32>
    %615 = vector.broadcast %614 : vector<4x1xf32> to vector<4x256xf32>
    %616 = arith.mulf %615, %612 : vector<4x256xf32>
    %617 = arith.addf %608, %616 : vector<4x256xf32>
    %cst_271 = arith.constant 0.000000e+00 : f32
    %618 = vector.broadcast %cst_271 : f32 to vector<4x1xf32>
    %619 = vector.extract_strided_slice %590 {offsets = [0, 0], sizes = [4, 255], strides = [1, 1]} : vector<4x256xf32> to vector<4x255xf32>
    %620 = tpu.concatenate %618, %619 in 1 : vector<4x1xf32>, vector<4x255xf32> -> vector<4x256xf32>
    %621 = arith.mulf %620, %7 : vector<4x256xf32>
    %c15_272 = arith.constant 15 : index
    %c0_273 = arith.constant 0 : index
    %c0_274 = arith.constant 0 : index
    %622 = vector.load %arg4[%c15_272, %c0_273, %c0_274] : memref<36x4x1xf32, #tpu.memory_space<vmem>>, vector<1x4x1xf32>
    %623 = vector.shape_cast %622 : vector<1x4x1xf32> to vector<4x1xf32>
    %624 = vector.broadcast %623 : vector<4x1xf32> to vector<4x256xf32>
    %625 = arith.mulf %624, %621 : vector<4x256xf32>
    %626 = arith.addf %617, %625 : vector<4x256xf32>
    %c19_275 = arith.constant 19 : index
    %c0_276 = arith.constant 0 : index
    %c0_277 = arith.constant 0 : index
    %627 = vector.load %arg4[%c19_275, %c0_276, %c0_277] : memref<36x4x1xf32, #tpu.memory_space<vmem>>, vector<1x4x1xf32>
    %628 = vector.shape_cast %627 : vector<1x4x1xf32> to vector<4x1xf32>
    %629 = vector.broadcast %628 : vector<4x1xf32> to vector<4x256xf32>
    %630 = arith.mulf %629, %590 : vector<4x256xf32>
    %631 = arith.addf %626, %630 : vector<4x256xf32>
    %cst_278 = arith.constant 0.000000e+00 : f32
    %632 = vector.broadcast %cst_278 : f32 to vector<4x1xf32>
    %633 = vector.extract_strided_slice %590 {offsets = [0, 1], sizes = [4, 255], strides = [1, 1]} : vector<4x256xf32> to vector<4x255xf32>
    %634 = tpu.concatenate %633, %632 in 1 : vector<4x255xf32>, vector<4x1xf32> -> vector<4x256xf32>
    %635 = arith.mulf %634, %9 : vector<4x256xf32>
    %c23_279 = arith.constant 23 : index
    %c0_280 = arith.constant 0 : index
    %c0_281 = arith.constant 0 : index
    %636 = vector.load %arg4[%c23_279, %c0_280, %c0_281] : memref<36x4x1xf32, #tpu.memory_space<vmem>>, vector<1x4x1xf32>
    %637 = vector.shape_cast %636 : vector<1x4x1xf32> to vector<4x1xf32>
    %638 = vector.broadcast %637 : vector<4x1xf32> to vector<4x256xf32>
    %639 = arith.mulf %638, %635 : vector<4x256xf32>
    %640 = arith.addf %631, %639 : vector<4x256xf32>
    %cst_282 = arith.constant 0.000000e+00 : f32
    %641 = vector.broadcast %cst_282 : f32 to vector<4x15xf32>
    %642 = vector.extract_strided_slice %590 {offsets = [0, 15], sizes = [4, 241], strides = [1, 1]} : vector<4x256xf32> to vector<4x241xf32>
    %643 = tpu.concatenate %642, %641 in 1 : vector<4x241xf32>, vector<4x15xf32> -> vector<4x256xf32>
    %644 = arith.mulf %643, %11 : vector<4x256xf32>
    %c27_283 = arith.constant 27 : index
    %c0_284 = arith.constant 0 : index
    %c0_285 = arith.constant 0 : index
    %645 = vector.load %arg4[%c27_283, %c0_284, %c0_285] : memref<36x4x1xf32, #tpu.memory_space<vmem>>, vector<1x4x1xf32>
    %646 = vector.shape_cast %645 : vector<1x4x1xf32> to vector<4x1xf32>
    %647 = vector.broadcast %646 : vector<4x1xf32> to vector<4x256xf32>
    %648 = arith.mulf %647, %644 : vector<4x256xf32>
    %649 = arith.addf %640, %648 : vector<4x256xf32>
    %cst_286 = arith.constant 0.000000e+00 : f32
    %650 = vector.broadcast %cst_286 : f32 to vector<4x16xf32>
    %651 = vector.extract_strided_slice %590 {offsets = [0, 16], sizes = [4, 240], strides = [1, 1]} : vector<4x256xf32> to vector<4x240xf32>
    %652 = tpu.concatenate %651, %650 in 1 : vector<4x240xf32>, vector<4x16xf32> -> vector<4x256xf32>
    %653 = arith.mulf %652, %13 : vector<4x256xf32>
    %c31_287 = arith.constant 31 : index
    %c0_288 = arith.constant 0 : index
    %c0_289 = arith.constant 0 : index
    %654 = vector.load %arg4[%c31_287, %c0_288, %c0_289] : memref<36x4x1xf32, #tpu.memory_space<vmem>>, vector<1x4x1xf32>
    %655 = vector.shape_cast %654 : vector<1x4x1xf32> to vector<4x1xf32>
    %656 = vector.broadcast %655 : vector<4x1xf32> to vector<4x256xf32>
    %657 = arith.mulf %656, %653 : vector<4x256xf32>
    %658 = arith.addf %649, %657 : vector<4x256xf32>
    %cst_290 = arith.constant 0.000000e+00 : f32
    %659 = vector.broadcast %cst_290 : f32 to vector<4x17xf32>
    %660 = vector.extract_strided_slice %590 {offsets = [0, 17], sizes = [4, 239], strides = [1, 1]} : vector<4x256xf32> to vector<4x239xf32>
    %661 = tpu.concatenate %660, %659 in 1 : vector<4x239xf32>, vector<4x17xf32> -> vector<4x256xf32>
    %662 = arith.mulf %661, %15 : vector<4x256xf32>
    %c35_291 = arith.constant 35 : index
    %c0_292 = arith.constant 0 : index
    %c0_293 = arith.constant 0 : index
    %663 = vector.load %arg4[%c35_291, %c0_292, %c0_293] : memref<36x4x1xf32, #tpu.memory_space<vmem>>, vector<1x4x1xf32>
    %664 = vector.shape_cast %663 : vector<1x4x1xf32> to vector<4x1xf32>
    %665 = vector.broadcast %664 : vector<4x1xf32> to vector<4x256xf32>
    %666 = arith.mulf %665, %662 : vector<4x256xf32>
    %667 = arith.addf %658, %666 : vector<4x256xf32>
    %c0_294 = arith.constant 0 : index
    %c0_295 = arith.constant 0 : index
    %668 = vector.load %arg5[%c0_294, %c0_295] : memref<4x1xf32, #tpu.memory_space<vmem>>, vector<4x1xf32>
    %669 = vector.broadcast %668 : vector<4x1xf32> to vector<4x256xf32>
    %670 = arith.addf %667, %669 : vector<4x256xf32>
    %c0_296 = arith.constant 0 : index
    %c0_297 = arith.constant 0 : index
    %c0_298 = arith.constant 0 : index
    %671 = vector.load %arg1[%c0_296, %c0_297, %c0_298] : memref<1x4x256xf32, #tpu.memory_space<vmem>>, vector<1x4x256xf32>
    %672 = vector.shape_cast %671 : vector<1x4x256xf32> to vector<4x256xf32>
    %673 = arith.addf %670, %672 : vector<4x256xf32>
    %c0_299 = arith.constant 0 : index
    %c0_300 = arith.constant 0 : index
    %c0_301 = arith.constant 0 : index
    %674 = vector.load %arg7[%c0_299, %c0_300, %c0_301] : memref<1x4x256xf32, #tpu.memory_space<vmem>>, vector<1x4x256xf32>
    %675 = vector.shape_cast %674 : vector<1x4x256xf32> to vector<4x256xf32>
    %676 = vector.shape_cast %673 : vector<4x256xf32> to vector<1x4x256xf32>
    tpu.vector_store %arg7[%c0_299, %c0_300, %c0_301], %676 {strides = array<i32>} : memref<1x4x256xf32, #tpu.memory_space<vmem>>, vector<1x4x256xf32>,
    return
  }
  func.func @transform_0(%arg0: i32) -> (i32, i32, i32) {
    %c0_i32 = arith.constant 0 : i32
    %c0_i32_0 = arith.constant 0 : i32
    %c0_i32_1 = arith.constant 0 : i32
    return %arg0, %c0_i32, %c0_i32_0 : i32, i32, i32
  }
  func.func @transform_1(%arg0: i32) -> (i32, i32, i32) {
    %c0_i32 = arith.constant 0 : i32
    %c0_i32_0 = arith.constant 0 : i32
    %c0_i32_1 = arith.constant 0 : i32
    %c0_i32_2 = arith.constant 0 : i32
    return %c0_i32, %c0_i32_0, %c0_i32_1 : i32, i32, i32
  }
  func.func @transform_2(%arg0: i32) -> (i32, i32) {
    %c0_i32 = arith.constant 0 : i32
    %c0_i32_0 = arith.constant 0 : i32
    %c0_i32_1 = arith.constant 0 : i32
    return %c0_i32, %c0_i32_0 : i32, i32
  }
  func.func @transform_3(%arg0: i32) -> (i32, i32, i32) {
    %c0_i32 = arith.constant 0 : i32
    %c0_i32_0 = arith.constant 0 : i32
    %c0_i32_1 = arith.constant 0 : i32
    %c0_i32_2 = arith.constant 0 : i32
    return %c0_i32, %c0_i32_0, %c0_i32_1 : i32, i32, i32
  }
  func.func @transform_4(%arg0: i32) -> (i32, i32) {
    %c0_i32 = arith.constant 0 : i32
    %c0_i32_0 = arith.constant 0 : i32
    %c0_i32_1 = arith.constant 0 : i32
    return %c0_i32, %c0_i32_0 : i32, i32
  }
  func.func @transform_5(%arg0: i32) -> (i32, i32, i32) {
    %c0_i32 = arith.constant 0 : i32
    %c0_i32_0 = arith.constant 0 : i32
    %c0_i32_1 = arith.constant 0 : i32
    %c0_i32_2 = arith.constant 0 : i32
    return %c0_i32, %c0_i32_0, %c0_i32_1 : i32, i32, i32
  }
  func.func @transform_6(%arg0: i32) -> (i32, i32, i32) {
    %c0_i32 = arith.constant 0 : i32
    %c0_i32_0 = arith.constant 0 : i32
    %c0_i32_1 = arith.constant 0 : i32
    return %arg0, %c0_i32, %c0_i32_0 : i32, i32, i32
  }
}

</mosaic_0001>

<llo_original>
// kernel: tpu_custom_call.1
$region0: #{tpu_custom_call.1}
  #allocation0 [shape = 'u32[]', space=smem, size = 0x4, offset = 0x4, fixed_abs, tag = 'smem constant byte address 0x4 - core index']
  #allocation1 [shape = 'u32[144,128]{1,0:T(1,128)}', space=vmem, size = 0x12000, scoped, tag = 'internal scratch']
  #allocation2 [shape = 'f32[4,256]{1,0:T(4,128)}', space=vmem, size = 0x1000, scoped, tag = 'scratch operand']
  %s0 = inlined_call_operand.vmem [shape: f32[2,4,256], index: 0, kind: input, shape index: {}]
  %s1 = inlined_call_operand.vmem [shape: f32[36,4,1], index: 1, kind: input, shape index: {}]
  %s2 = inlined_call_operand.vmem [shape: f32[4,1], index: 2, kind: input, shape index: {}]
  %s3 = inlined_call_operand.vmem [shape: f32[36,4,1], index: 3, kind: input, shape index: {}]
  %s4 = inlined_call_operand.vmem [shape: f32[4,1], index: 4, kind: input, shape index: {}]
  %s5 = inlined_call_operand.vmem [shape: f32[9,4,256], index: 5, kind: input, shape index: {}]
  %s6 = inlined_call_operand.hbm [shape: f32[2,4,256], index: 6, kind: output, shape index: {}]
  %s7 = sld [smem:[#allocation0]]
  $region57: #{tpu_custom_call.1} parent=0
    _
  %s9 = ssub.s32 1, %s7
  %s10 = scalar_select 0, %s9, %s7
  $region1: #{tpu_custom_call.1} parent=0
    #allocation3 [shape = 'u8[8192]{0}', space=vmem, size = 0x2000, scoped, tag = 'output window, operand 0']
    #allocation4 [shape = 's32[2]{0}', space=sflag, size = 0x8, scoped, tag = 'scoped memory for tpu_custom_call.1']
    %11 = vsyncpa [#allocation4], 0
    %s12 = scalar_lea.sflag [#allocation4], 1
    %13 = vsyncpa %s12, 0
    loop: start=0, step=1, limit=4
    $region2: #{tpu_custom_call.1} parent=1 // loop_pre_header
      _
    $region3: #{tpu_custom_call.1} parent=1 // loop_header
      %s15 = sphi 0, %s19
      %p16 = scmp.ge.s32.totalorder %s15, 4
      %s25 = sphi 0, %s27
      %s28 = sphi 0, %s25
      %s29 = sphi 0, %s28
      %s45 = sphi 0, %s29
      %s49 = sphi 0, %s49
      %s51 = sphi 0, %s49
      %s52 = sphi 0, %s51
      %s66 = sphi 0, %s52
      %s70 = sphi 0, %s70
      %s72 = sphi 0, %s70
      %s73 = sphi 0, %s72
      %s87 = sphi 0, %s73
      %s91 = sphi 0, %s91
      %s93 = sphi 0, %s91
      %s94 = sphi 0, %s93
      %s108 = sphi 0, %s94
      %s112 = sphi 0, %s112
      %s114 = sphi 0, %s112
      %s115 = sphi 0, %s114
      %s129 = sphi 0, %s115
      %s133 = sphi 0, %s133
      %s135 = sphi 0, %s133
      %s136 = sphi 0, %s135
      %s150 = sphi 0, %s136
      %s156 = sphi 0, %s158
      %s159 = sphi 0, %s156
      %s160 = sphi 0, %s159
      %s176 = sphi 0, %s160
    $region4: #{tpu_custom_call.1} parent=1 // loop_header_branch
      %18 = sbr.rel (%p16) target = $region8
    $region5: #{tpu_custom_call.1} parent=1 // loop_body
      %s20 = ssub.s32 %s15, 1
      %s21 = ssub.s32 %s15, 2
      %s22 = sadd.s32 %s15, 1
      %s23 = ssub.s32 %s15, %s22
      %p24 = scmp.eq.s32.totalorder %s23, 0
      %s26 = sadd.s32 %s25, 1
      %s27 = scalar_select %p24, %s25, %s26
      %p30 = pneg %p24
      %p31 = scmp.eq.s32.totalorder %s15, 1
      %p32 = por %p30, %p31
      %p33 = scmp.ne.s32.totalorder %s25, %s28
      %p34 = scmp.eq.s32.totalorder %s15, 0
      %p35 = por %p33, %p34
      %p36 = scmp.ne.s32.totalorder %s25, %s28
      %p37 = scmp.eq.s32.totalorder %s20, 1
      %p38 = por %p36, %p37
      %p39 = scmp.ne.s32.totalorder %s28, %s29
      %p40 = scmp.eq.s32.totalorder %s20, 0
      %p41 = por %p39, %p40
      %p42 = scmp.ne.s32.totalorder %s28, %s29
      %p43 = scmp.eq.s32.totalorder %s21, 1
      %p44 = por %p42, %p43
      %p46 = scmp.ne.s32.totalorder %s29, %s45
      %p47 = scmp.eq.s32.totalorder %s21, 0
      %p48 = por %p46, %p47
      %s50 = sadd.s32 %s49, 1
      %p53 = scmp.eq.s32.totalorder %s15, 1
      %p54 = scmp.ne.s32.totalorder %s49, %s51
      %p55 = scmp.eq.s32.totalorder %s15, 0
      %p56 = por %p54, %p55
      %p57 = scmp.ne.s32.totalorder %s49, %s51
      %p58 = scmp.eq.s32.totalorder %s20, 1
      %p59 = por %p57, %p58
      %p60 = scmp.ne.s32.totalorder %s51, %s52
      %p61 = scmp.eq.s32.totalorder %s20, 0
      %p62 = por %p60, %p61
      %p63 = scmp.ne.s32.totalorder %s51, %s52
      %p64 = scmp.eq.s32.totalorder %s21, 1
      %p65 = por %p63, %p64
      %p67 = scmp.ne.s32.totalorder %s52, %s66
      %p68 = scmp.eq.s32.totalorder %s21, 0
      %p69 = por %p67, %p68
      %s71 = sadd.s32 %s70, 1
      %p74 = scmp.eq.s32.totalorder %s15, 1
      %p75 = scmp.ne.s32.totalorder %s70, %s72
      %p76 = scmp.eq.s32.totalorder %s15, 0
      %p77 = por %p75, %p76
      %p78 = scmp.ne.s32.totalorder %s70, %s72
      %p79 = scmp.eq.s32.totalorder %s20, 1
      %p80 = por %p78, %p79
      %p81 = scmp.ne.s32.totalorder %s72, %s73
      %p82 = scmp.eq.s32.totalorder %s20, 0
      %p83 = por %p81, %p82
      %p84 = scmp.ne.s32.totalorder %s72, %s73
      %p85 = scmp.eq.s32.totalorder %s21, 1
      %p86 = por %p84, %p85
      %p88 = scmp.ne.s32.totalorder %s73, %s87
      %p89 = scmp.eq.s32.totalorder %s21, 0
      %p90 = por %p88, %p89
      %s92 = sadd.s32 %s91, 1
      %p95 = scmp.eq.s32.totalorder %s15, 1
      %p96 = scmp.ne.s32.totalorder %s91, %s93
      %p97 = scmp.eq.s32.totalorder %s15, 0
      %p98 = por %p96, %p97
      %p99 = scmp.ne.s32.totalorder %s91, %s93
      %p100 = scmp.eq.s32.totalorder %s20, 1
      %p101 = por %p99, %p100
      %p102 = scmp.ne.s32.totalorder %s93, %s94
      %p103 = scmp.eq.s32.totalorder %s20, 0
      %p104 = por %p102, %p103
      %p105 = scmp.ne.s32.totalorder %s93, %s94
      %p106 = scmp.eq.s32.totalorder %s21, 1
      %p107 = por %p105, %p106
      %p109 = scmp.ne.s32.totalorder %s94, %s108
      %p110 = scmp.eq.s32.totalorder %s21, 0
      %p111 = por %p109, %p110
      %s113 = sadd.s32 %s112, 1
      %p116 = scmp.eq.s32.totalorder %s15, 1
      %p117 = scmp.ne.s32.totalorder %s112, %s114
      %p118 = scmp.eq.s32.totalorder %s15, 0
      %p119 = por %p117, %p118
      %p120 = scmp.ne.s32.totalorder %s112, %s114
      %p121 = scmp.eq.s32.totalorder %s20, 1
      %p122 = por %p120, %p121
      %p123 = scmp.ne.s32.totalorder %s114, %s115
      %p124 = scmp.eq.s32.totalorder %s20, 0
      %p125 = por %p123, %p124
      %p126 = scmp.ne.s32.totalorder %s114, %s115
      %p127 = scmp.eq.s32.totalorder %s21, 1
      %p128 = por %p126, %p127
      %p130 = scmp.ne.s32.totalorder %s115, %s129
      %p131 = scmp.eq.s32.totalorder %s21, 0
      %p132 = por %p130, %p131
      %s134 = sadd.s32 %s133, 1
      %p137 = scmp.eq.s32.totalorder %s15, 1
      %p138 = scmp.ne.s32.totalorder %s133, %s135
      %p139 = scmp.eq.s32.totalorder %s15, 0
      %p140 = por %p138, %p139
      %p141 = scmp.ne.s32.totalorder %s133, %s135
      %p142 = scmp.eq.s32.totalorder %s20, 1
      %p143 = por %p141, %p142
      %p144 = scmp.ne.s32.totalorder %s135, %s136
      %p145 = scmp.eq.s32.totalorder %s20, 0
      %p146 = por %p144, %p145
      %p147 = scmp.ne.s32.totalorder %s135, %s136
      %p148 = scmp.eq.s32.totalorder %s21, 1
      %p149 = por %p147, %p148
      %p151 = scmp.ne.s32.totalorder %s136, %s150
      %p152 = scmp.eq.s32.totalorder %s21, 0
      %p153 = por %p151, %p152
      %s154 = ssub.s32 %s15, %s22
      %p155 = scmp.eq.s32.totalorder %s154, 0
      %s157 = sadd.s32 %s156, 1
      %s158 = scalar_select %p155, %s156, %s157
      %p161 = pneg %p155
      %p162 = scmp.eq.s32.totalorder %s15, 1
      %p163 = por %p161, %p162
      %p164 = scmp.ne.s32.totalorder %s156, %s159
      %p165 = scmp.eq.s32.totalorder %s15, 0
      %p166 = por %p164, %p165
      %p167 = scmp.ne.s32.totalorder %s156, %s159
      %p168 = scmp.eq.s32.totalorder %s20, 1
      %p169 = por %p167, %p168
      %p170 = scmp.ne.s32.totalorder %s159, %s160
      %p171 = scmp.eq.s32.totalorder %s20, 0
      %p172 = por %p170, %p171
      %p173 = scmp.ne.s32.totalorder %s159, %s160
      %p174 = scmp.eq.s32.totalorder %s21, 1
      %p175 = por %p173, %p174
      %p177 = scmp.ne.s32.totalorder %s160, %s176
      %p178 = scmp.eq.s32.totalorder %s21, 0
      %p179 = por %p177, %p178
      %p180 = scmp.le.s32.totalorder 1, %s15
      %p181 = scmp.lt.s32.totalorder %s15, 3
      %p182 = pnand %p180, %p181
      %p183 = pneg %p182
      // Predicated region
      $region9: #{tpu_custom_call.1} parent=5 // pred_check
        _
      $region10: #{tpu_custom_call.1} parent=5 // pred_check_branch
        %185 = sbr.rel (%p182) target = $region12
      $region11: #{tpu_custom_call.1} parent=5 // pred_region
        %s186 = ssub.s32 %s15, 1
        // Predicated region
        $region13: #{tpu_custom_call.1} parent=11 // pred_check
          %p187 = pneg %p62
        $region14: #{tpu_custom_call.1} parent=11 // pred_check_branch
          %189 = sbr.rel (%p187) target = $region16
        $region15: #{tpu_custom_call.1} parent=11 // pred_region
          _
        $region16: #{tpu_custom_call.1} parent=11 // pred_fallthru
          _
        // Predicated region
        $region17: #{tpu_custom_call.1} parent=11 // pred_check
          %p190 = pneg %p83
        $region18: #{tpu_custom_call.1} parent=11 // pred_check_branch
          %192 = sbr.rel (%p190) target = $region20
        $region19: #{tpu_custom_call.1} parent=11 // pred_region
          _
        $region20: #{tpu_custom_call.1} parent=11 // pred_fallthru
          _
        // Predicated region
        $region21: #{tpu_custom_call.1} parent=11 // pred_check
          %p193 = pneg %p104
        $region22: #{tpu_custom_call.1} parent=11 // pred_check_branch
          %195 = sbr.rel (%p193) target = $region24
        $region23: #{tpu_custom_call.1} parent=11 // pred_region
          _
        $region24: #{tpu_custom_call.1} parent=11 // pred_fallthru
          _
        // Predicated region
        $region25: #{tpu_custom_call.1} parent=11 // pred_check
          %p196 = pneg %p125
        $region26: #{tpu_custom_call.1} parent=11 // pred_check_branch
          %198 = sbr.rel (%p196) target = $region28
        $region27: #{tpu_custom_call.1} parent=11 // pred_region
          _
        $region28: #{tpu_custom_call.1} parent=11 // pred_fallthru
          _
        // Predicated region
        $region29: #{tpu_custom_call.1} parent=11 // pred_check
          %p199 = pneg %p146
        $region30: #{tpu_custom_call.1} parent=11 // pred_check_branch
          %201 = sbr.rel (%p199) target = $region32
        $region31: #{tpu_custom_call.1} parent=11 // pred_region
          _
        $region32: #{tpu_custom_call.1} parent=11 // pred_fallthru
          _
      $region12: #{tpu_custom_call.1} parent=5 // pred_fallthru
        _
      %p202 = scmp.lt.s32.totalorder %s15, 2
      // Predicated region
      $region33: #{tpu_custom_call.1} parent=5 // pred_check
        %p203 = pneg %p202
      $region34: #{tpu_custom_call.1} parent=5 // pred_check_branch
        %205 = sbr.rel (%p203) target = $region36
      $region35: #{tpu_custom_call.1} parent=5 // pred_region
        // Predicated region
        $region37: #{tpu_custom_call.1} parent=35 // pred_check
          %p206 = pneg %p35
        $region38: #{tpu_custom_call.1} parent=35 // pred_check_branch
          %208 = sbr.rel (%p206) target = $region40
        $region39: #{tpu_custom_call.1} parent=35 // pred_region
          %p209 = scmp.lt.s32.totalorder %s15, 1
          %s210 = scalar_select %p209, %s15, 1
          %s211 = smul.addr %s210, 2
          %s212 = smul.addr %s211, 4
          %s213 = scalar_lea.vmem %s0, %s212
        $region40: #{tpu_custom_call.1} parent=35 // pred_fallthru
          _
      $region36: #{tpu_custom_call.1} parent=5 // pred_fallthru
        _
      %p214 = scmp.le.s32.totalorder 1, %s15
      %p215 = scmp.lt.s32.totalorder %s15, 3
      %p216 = pnand %p214, %p215
      %p217 = pneg %p216
      // Predicated region
      $region41: #{tpu_custom_call.1} parent=5 // pred_check
        _
      $region42: #{tpu_custom_call.1} parent=5 // pred_check_branch
        %219 = sbr.rel (%p216) target = $region44
      $region43: #{tpu_custom_call.1} parent=5 // pred_region
        %s220 = ssub.s32 %s15, 1
        %p221 = scmp.lt.s32.totalorder %s20, 1
        %s222 = scalar_select %p221, %s20, 1
        %s223 = smul.addr %s222, 2
        %s224 = smul.addr %s223, 4
        %s225 = scalar_lea.vmem %s0, %s224
        %p226 = pneg %p41
        %p227 = pneg %p38
        %p228 = pneg %p62
        %p229 = pneg %p59
        %p230 = pneg %p83
        %p231 = pneg %p80
        %p232 = pneg %p104
        %p233 = pneg %p101
        %p234 = pneg %p125
        %p235 = pneg %p122
        %p236 = pneg %p146
        %p237 = pneg %p143
        %p238 = pneg %p172
        %p239 = pneg %p169
        %s240 = sand.u32 %s159, 1
        %s241 = scalar_lea.sflag [#allocation4], %s240
        %s242 = sand.u32 %s159, 1
        %s243 = smul.addr %s242, 8
        %s244 = scalar_lea.vmem [#allocation3], %s243
        %p245 = scmp.lt.s32.totalorder %s20, 1
        %s246 = scalar_select %p245, %s20, 1
        %s247 = smul.addr %s246, 2
        %s248 = smul.addr %s247, 4
        %s249 = scalar_lea.vmem %s0, %s248
        %v250 = vld [vmem:[%s5] sm:$0xff]
        %s251 = scalar_lea.vmem %s5, 8
        %v252 = vld [vmem:[%s251] sm:$0xff]
        %s253 = scalar_lea.vmem %s5, 16
        %v254 = vld [vmem:[%s253] sm:$0xff]
        %s255 = scalar_lea.vmem %s5, 24
        %v256 = vld [vmem:[%s255] sm:$0xff]
        %s257 = scalar_lea.vmem %s5, 40
        %v258 = vld [vmem:[%s257] sm:$0xff]
        %s259 = scalar_lea.vmem %s5, 48
        %v260 = vld [vmem:[%s259] sm:$0xff]
        %s261 = scalar_lea.vmem %s5, 56
        %v262 = vld [vmem:[%s261] sm:$0xff]
        %s263 = scalar_lea.vmem %s5, 64
        %v264 = vld [vmem:[%s263] sm:$0xff]
        %v265 = vld [vmem:[%s249] ss:$4 sm:$0x3]
        %v267 = vlaneseq
        %v268 = vshrl.u32 %v267, 7
        %v269 = vsub.s32 0, %v268
        %v270 = vrot.slane %v265, %v269
        %v271 = vlaneseq
        %v272 = vshrl.u32 %v271, 7
        %v273 = vsub.s32 1, %v272
        %v274 = vrot.slane %v265, %v273
        %277 = vrot.lane.b32.xlu0 %v270, 17
        %v278 = vpop.permute.xlu0 %277
        %279 = vrot.lane.b32.xlu0 %v274, 17
        %v280 = vpop.permute.xlu0 %279
        %vm281 = vcmask 138240
        %v282 = vsel %vm281, %v278, %v280
        %v285 = vsel %vm281, 0.0, %v278
        %v287 = vcombine.high %v250, %v250
        %v289 = vmul.f32 %v285, %v250
        %v290 = vmul.f32 %v282, %v287
        %v291 = vld [vmem:[%s1] sm:$0xf]
        %293 = vset.pattern.permute.xlu0 0
        %294 = vperm.xlu0 %293, %v291
        %v295 = vpop.permute.xlu0 %294
        %v297 = vmul.f32 %v295, %v289
        %v298 = vmul.f32 %v295, %v290
        %v299 = vadd.f32 %v297, 0.0
        %v300 = vadd.f32 %v298, 0.0
        %301 = vrot.lane.b32.xlu0 %v270, 16
        %v302 = vpop.permute.xlu0 %301
        %303 = vrot.lane.b32.xlu0 %v274, 16
        %v304 = vpop.permute.xlu0 %303
        %vm305 = vcmask 130048
        %v306 = vsel %vm305, %v302, %v304
        %v309 = vsel %vm305, 0.0, %v302
        %v311 = vcombine.high %v252, %v252
        %v313 = vmul.f32 %v309, %v252
        %v314 = vmul.f32 %v306, %v311
        %s315 = scalar_lea.vmem %s1, 16
        %v316 = vld [vmem:[%s315] sm:$0xf]
        %318 = vset.pattern.permute.xlu0 0
        %319 = vperm.xlu0 %318, %v316
        %v320 = vpop.permute.xlu0 %319
        %v322 = vmul.f32 %v320, %v313
        %v323 = vmul.f32 %v320, %v314
        %v324 = vadd.f32 %v299, %v322
        %v325 = vadd.f32 %v300, %v323
        %326 = vrot.lane.b32.xlu0 %v270, 15
        %v327 = vpop.permute.xlu0 %326
        %328 = vrot.lane.b32.xlu0 %v274, 15
        %v329 = vpop.permute.xlu0 %328
        %vm330 = vcmask 121856
        %v331 = vsel %vm330, %v327, %v329
        %v334 = vsel %vm330, 0.0, %v327
        %v336 = vcombine.high %v254, %v254
        %v338 = vmul.f32 %v334, %v254
        %v339 = vmul.f32 %v331, %v336
        %s340 = scalar_lea.vmem %s1, 32
        %v341 = vld [vmem:[%s340] sm:$0xf]
        %343 = vset.pattern.permute.xlu0 0
        %344 = vperm.xlu0 %343, %v341
        %v345 = vpop.permute.xlu0 %344
        %v347 = vmul.f32 %v345, %v338
        %v348 = vmul.f32 %v345, %v339
        %v349 = vadd.f32 %v324, %v347
        %v350 = vadd.f32 %v325, %v348
        %351 = vrot.lane.b32.xlu0 %v270, 1
        %v352 = vpop.permute.xlu0 %351
        %353 = vrot.lane.b32.xlu0 %v274, 1
        %v354 = vpop.permute.xlu0 %353
        %vm355 = vcmask 7168
        %v356 = vsel %vm355, %v352, %v354
        %v359 = vsel %vm355, 0.0, %v352
        %v361 = vcombine.high %v256, %v256
        %v363 = vmul.f32 %v359, %v256
        %v364 = vmul.f32 %v356, %v361
        %s365 = scalar_lea.vmem %s1, 48
        %v366 = vld [vmem:[%s365] sm:$0xf]
        %368 = vset.pattern.permute.xlu0 0
        %369 = vperm.xlu0 %368, %v366
        %v370 = vpop.permute.xlu0 %369
        %v372 = vmul.f32 %v370, %v363
        %v373 = vmul.f32 %v370, %v364
        %v374 = vadd.f32 %v349, %v372
        %v375 = vadd.f32 %v350, %v373
        %s376 = scalar_lea.vmem %s1, 64
        %v377 = vld [vmem:[%s376] sm:$0xf]
        %379 = vset.pattern.permute.xlu0 0
        %380 = vperm.xlu0 %379, %v377
        %v381 = vpop.permute.xlu0 %380
        %v383 = vmul.f32 %v381, %v270
        %v384 = vmul.f32 %v381, %v274
        %v385 = vadd.f32 %v374, %v383
        %v386 = vadd.f32 %v375, %v384
        %387 = vrot.lane.b32.xlu0 %v270, 127
        %v388 = vpop.permute.xlu0 %387
        %389 = vrot.lane.b32.xlu0 %v274, 127
        %v390 = vpop.permute.xlu0 %389
        %vm391 = vcmask 1039360
        %v392 = vsel %vm391, %v388, %v390
        %v395 = vsel %vm391, %v390, 0.0
        %v397 = vcombine.high %v258, %v258
        %v399 = vmul.f32 %v392, %v258
        %v400 = vmul.f32 %v395, %v397
        %s401 = scalar_lea.vmem %s1, 80
        %v402 = vld [vmem:[%s401] sm:$0xf]
        %404 = vset.pattern.permute.xlu0 0
        %405 = vperm.xlu0 %404, %v402
        %v406 = vpop.permute.xlu0 %405
        %v408 = vmul.f32 %v406, %v399
        %v409 = vmul.f32 %v406, %v400
        %v410 = vadd.f32 %v385, %v408
        %v411 = vadd.f32 %v386, %v409
        %412 = vrot.lane.b32.xlu0 %v270, 113
        %v413 = vpop.permute.xlu0 %412
        %414 = vrot.lane.b32.xlu0 %v274, 113
        %v415 = vpop.permute.xlu0 %414
        %vm416 = vcmask 924672
        %v417 = vsel %vm416, %v413, %v415
        %v420 = vsel %vm416, %v415, 0.0
        %v422 = vcombine.high %v260, %v260
        %v424 = vmul.f32 %v417, %v260
        %v425 = vmul.f32 %v420, %v422
        %s426 = scalar_lea.vmem %s1, 96
        %v427 = vld [vmem:[%s426] sm:$0xf]
        %429 = vset.pattern.permute.xlu0 0
        %430 = vperm.xlu0 %429, %v427
        %v431 = vpop.permute.xlu0 %430
        %v433 = vmul.f32 %v431, %v424
        %v434 = vmul.f32 %v431, %v425
        %v435 = vadd.f32 %v410, %v433
        %v436 = vadd.f32 %v411, %v434
        %437 = vrot.lane.b32.xlu0 %v270, 112
        %v438 = vpop.permute.xlu0 %437
        %439 = vrot.lane.b32.xlu0 %v274, 112
        %v440 = vpop.permute.xlu0 %439
        %vm441 = vcmask 916480
        %v442 = vsel %vm441, %v438, %v440
        %v445 = vsel %vm441, %v440, 0.0
        %v447 = vcombine.high %v262, %v262
        %v449 = vmul.f32 %v442, %v262
        %v450 = vmul.f32 %v445, %v447
        %s451 = scalar_lea.vmem %s1, 112
        %v452 = vld [vmem:[%s451] sm:$0xf]
        %454 = vset.pattern.permute.xlu0 0
        %455 = vperm.xlu0 %454, %v452
        %v456 = vpop.permute.xlu0 %455
        %v458 = vmul.f32 %v456, %v449
        %v459 = vmul.f32 %v456, %v450
        %v460 = vadd.f32 %v435, %v458
        %v461 = vadd.f32 %v436, %v459
        %462 = vrot.lane.b32.xlu0 %v270, 111
        %v463 = vpop.permute.xlu0 %462
        %464 = vrot.lane.b32.xlu0 %v274, 111
        %v465 = vpop.permute.xlu0 %464
        %vm466 = vcmask 908288
        %v467 = vsel %vm466, %v463, %v465
        %v470 = vsel %vm466, %v465, 0.0
        %v472 = vcombine.high %v264, %v264
        %v474 = vmul.f32 %v467, %v264
        %v475 = vmul.f32 %v470, %v472
        %s476 = scalar_lea.vmem %s1, 128
        %v477 = vld [vmem:[%s476] sm:$0xf]
        %479 = vset.pattern.permute.xlu0 0
        %480 = vperm.xlu0 %479, %v477
        %v481 = vpop.permute.xlu0 %480
        %v483 = vmul.f32 %v481, %v474
        %v484 = vmul.f32 %v481, %v475
        %v485 = vadd.f32 %v460, %v483
        %v486 = vadd.f32 %v461, %v484
        %s487 = scalar_lea.vmem %s249, 1
        %v488 = vld [vmem:[%s487] ss:$4 sm:$0x3]
        %v490 = vlaneseq
        %v491 = vshrl.u32 %v490, 7
        %v492 = vsub.s32 0, %v491
        %v493 = vrot.slane %v488, %v492
        %v494 = vlaneseq
        %v495 = vshrl.u32 %v494, 7
        %v496 = vsub.s32 1, %v495
        %v497 = vrot.slane %v488, %v496
        %500 = vrot.lane.b32.xlu0 %v493, 17
        %v501 = vpop.permute.xlu0 %500
        %502 = vrot.lane.b32.xlu0 %v497, 17
        %v503 = vpop.permute.xlu0 %502
        %v504 = vsel %vm281, %v501, %v503
        %v507 = vsel %vm281, 0.0, %v501
        %v508 = vmul.f32 %v507, %v250
        %v509 = vmul.f32 %v504, %v287
        %s510 = scalar_lea.vmem %s1, 4
        %v511 = vld [vmem:[%s510] sm:$0xf]
        %513 = vset.pattern.permute.xlu0 0
        %514 = vperm.xlu0 %513, %v511
        %v515 = vpop.permute.xlu0 %514
        %v517 = vmul.f32 %v515, %v508
        %v518 = vmul.f32 %v515, %v509
        %v519 = vadd.f32 %v485, %v517
        %v520 = vadd.f32 %v486, %v518
        %521 = vrot.lane.b32.xlu0 %v493, 16
        %v522 = vpop.permute.xlu0 %521
        %523 = vrot.lane.b32.xlu0 %v497, 16
        %v524 = vpop.permute.xlu0 %523
        %v525 = vsel %vm305, %v522, %v524
        %v528 = vsel %vm305, 0.0, %v522
        %v529 = vmul.f32 %v528, %v252
        %v530 = vmul.f32 %v525, %v311
        %s531 = scalar_lea.vmem %s1, 20
        %v532 = vld [vmem:[%s531] sm:$0xf]
        %534 = vset.pattern.permute.xlu0 0
        %535 = vperm.xlu0 %534, %v532
        %v536 = vpop.permute.xlu0 %535
        %v538 = vmul.f32 %v536, %v529
        %v539 = vmul.f32 %v536, %v530
        %v540 = vadd.f32 %v519, %v538
        %v541 = vadd.f32 %v520, %v539
        %542 = vrot.lane.b32.xlu0 %v493, 15
        %v543 = vpop.permute.xlu0 %542
        %544 = vrot.lane.b32.xlu0 %v497, 15
        %v545 = vpop.permute.xlu0 %544
        %v546 = vsel %vm330, %v543, %v545
        %v549 = vsel %vm330, 0.0, %v543
        %v550 = vmul.f32 %v549, %v254
        %v551 = vmul.f32 %v546, %v336
        %s552 = scalar_lea.vmem %s1, 36
        %v553 = vld [vmem:[%s552] sm:$0xf]
        %555 = vset.pattern.permute.xlu0 0
        %556 = vperm.xlu0 %555, %v553
        %v557 = vpop.permute.xlu0 %556
        %v559 = vmul.f32 %v557, %v550
        %v560 = vmul.f32 %v557, %v551
        %v561 = vadd.f32 %v540, %v559
        %v562 = vadd.f32 %v541, %v560
        %563 = vrot.lane.b32.xlu0 %v493, 1
        %v564 = vpop.permute.xlu0 %563
        %565 = vrot.lane.b32.xlu0 %v497, 1
        %v566 = vpop.permute.xlu0 %565
        %v567 = vsel %vm355, %v564, %v566
        %v570 = vsel %vm355, 0.0, %v564
        %v571 = vmul.f32 %v570, %v256
        %v572 = vmul.f32 %v567, %v361
        %s573 = scalar_lea.vmem %s1, 52
        %v574 = vld [vmem:[%s573] sm:$0xf]
        %576 = vset.pattern.permute.xlu0 0
        %577 = vperm.xlu0 %576, %v574
        %v578 = vpop.permute.xlu0 %577
        %v580 = vmul.f32 %v578, %v571
        %v581 = vmul.f32 %v578, %v572
        %v582 = vadd.f32 %v561, %v580
        %v583 = vadd.f32 %v562, %v581
        %s584 = scalar_lea.vmem %s1, 68
        %v585 = vld [vmem:[%s584] sm:$0xf]
        %587 = vset.pattern.permute.xlu0 0
        %588 = vperm.xlu0 %587, %v585
        %v589 = vpop.permute.xlu0 %588
        %v591 = vmul.f32 %v589, %v493
        %v592 = vmul.f32 %v589, %v497
        %v593 = vadd.f32 %v582, %v591
        %v594 = vadd.f32 %v583, %v592
        %595 = vrot.lane.b32.xlu0 %v493, 127
        %v596 = vpop.permute.xlu0 %595
        %597 = vrot.lane.b32.xlu0 %v497, 127
        %v598 = vpop.permute.xlu0 %597
        %v599 = vsel %vm391, %v596, %v598
        %v602 = vsel %vm391, %v598, 0.0
        %v603 = vmul.f32 %v599, %v258
        %v604 = vmul.f32 %v602, %v397
        %s605 = scalar_lea.vmem %s1, 84
        %v606 = vld [vmem:[%s605] sm:$0xf]
        %608 = vset.pattern.permute.xlu0 0
        %609 = vperm.xlu0 %608, %v606
        %v610 = vpop.permute.xlu0 %609
        %v612 = vmul.f32 %v610, %v603
        %v613 = vmul.f32 %v610, %v604
        %v614 = vadd.f32 %v593, %v612
        %v615 = vadd.f32 %v594, %v613
        %616 = vrot.lane.b32.xlu0 %v493, 113
        %v617 = vpop.permute.xlu0 %616
        %618 = vrot.lane.b32.xlu0 %v497, 113
        %v619 = vpop.permute.xlu0 %618
        %v620 = vsel %vm416, %v617, %v619
        %v623 = vsel %vm416, %v619, 0.0
        %v624 = vmul.f32 %v620, %v260
        %v625 = vmul.f32 %v623, %v422
        %s626 = scalar_lea.vmem %s1, 100
        %v627 = vld [vmem:[%s626] sm:$0xf]
        %629 = vset.pattern.permute.xlu0 0
        %630 = vperm.xlu0 %629, %v627
        %v631 = vpop.permute.xlu0 %630
        %v633 = vmul.f32 %v631, %v624
        %v634 = vmul.f32 %v631, %v625
        %v635 = vadd.f32 %v614, %v633
        %v636 = vadd.f32 %v615, %v634
        %637 = vrot.lane.b32.xlu0 %v493, 112
        %v638 = vpop.permute.xlu0 %637
        %639 = vrot.lane.b32.xlu0 %v497, 112
        %v640 = vpop.permute.xlu0 %639
        %v641 = vsel %vm441, %v638, %v640
        %v644 = vsel %vm441, %v640, 0.0
        %v645 = vmul.f32 %v641, %v262
        %v646 = vmul.f32 %v644, %v447
        %s647 = scalar_lea.vmem %s1, 116
        %v648 = vld [vmem:[%s647] sm:$0xf]
        %650 = vset.pattern.permute.xlu0 0
        %651 = vperm.xlu0 %650, %v648
        %v652 = vpop.permute.xlu0 %651
        %v654 = vmul.f32 %v652, %v645
        %v655 = vmul.f32 %v652, %v646
        %v656 = vadd.f32 %v635, %v654
        %v657 = vadd.f32 %v636, %v655
        %658 = vrot.lane.b32.xlu0 %v493, 111
        %v659 = vpop.permute.xlu0 %658
        %660 = vrot.lane.b32.xlu0 %v497, 111
        %v661 = vpop.permute.xlu0 %660
        %v662 = vsel %vm466, %v659, %v661
        %v665 = vsel %vm466, %v661, 0.0
        %v666 = vmul.f32 %v662, %v264
        %v667 = vmul.f32 %v665, %v472
        %s668 = scalar_lea.vmem %s1, 132
        %v669 = vld [vmem:[%s668] sm:$0xf]
        %671 = vset.pattern.permute.xlu0 0
        %672 = vperm.xlu0 %671, %v669
        %v673 = vpop.permute.xlu0 %672
        %v675 = vmul.f32 %v673, %v666
        %v676 = vmul.f32 %v673, %v667
        %v677 = vadd.f32 %v656, %v675
        %v678 = vadd.f32 %v657, %v676
        %s679 = scalar_lea.vmem %s249, 2
        %v680 = vld [vmem:[%s679] ss:$4 sm:$0x3]
        %v682 = vlaneseq
        %v683 = vshrl.u32 %v682, 7
        %v684 = vsub.s32 0, %v683
        %v685 = vrot.slane %v680, %v684
        %v686 = vlaneseq
        %v687 = vshrl.u32 %v686, 7
        %v688 = vsub.s32 1, %v687
        %v689 = vrot.slane %v680, %v688
        %692 = vrot.lane.b32.xlu0 %v685, 17
        %v693 = vpop.permute.xlu0 %692
        %694 = vrot.lane.b32.xlu0 %v689, 17
        %v695 = vpop.permute.xlu0 %694
        %v696 = vsel %vm281, %v693, %v695
        %v699 = vsel %vm281, 0.0, %v693
        %v700 = vmul.f32 %v699, %v250
        %v701 = vmul.f32 %v696, %v287
        %s702 = scalar_lea.vmem %s1, 8
        %v703 = vld [vmem:[%s702] sm:$0xf]
        %705 = vset.pattern.permute.xlu0 0
        %706 = vperm.xlu0 %705, %v703
        %v707 = vpop.permute.xlu0 %706
        %v709 = vmul.f32 %v707, %v700
        %v710 = vmul.f32 %v707, %v701
        %v711 = vadd.f32 %v677, %v709
        %v712 = vadd.f32 %v678, %v710
        %713 = vrot.lane.b32.xlu0 %v685, 16
        %v714 = vpop.permute.xlu0 %713
        %715 = vrot.lane.b32.xlu0 %v689, 16
        %v716 = vpop.permute.xlu0 %715
        %v717 = vsel %vm305, %v714, %v716
        %v720 = vsel %vm305, 0.0, %v714
        %v721 = vmul.f32 %v720, %v252
        %v722 = vmul.f32 %v717, %v311
        %s723 = scalar_lea.vmem %s1, 24
        %v724 = vld [vmem:[%s723] sm:$0xf]
        %726 = vset.pattern.permute.xlu0 0
        %727 = vperm.xlu0 %726, %v724
        %v728 = vpop.permute.xlu0 %727
        %v730 = vmul.f32 %v728, %v721
        %v731 = vmul.f32 %v728, %v722
        %v732 = vadd.f32 %v711, %v730
        %v733 = vadd.f32 %v712, %v731
        %734 = vrot.lane.b32.xlu0 %v685, 15
        %v735 = vpop.permute.xlu0 %734
        %736 = vrot.lane.b32.xlu0 %v689, 15
        %v737 = vpop.permute.xlu0 %736
        %v738 = vsel %vm330, %v735, %v737
        %v741 = vsel %vm330, 0.0, %v735
        %v742 = vmul.f32 %v741, %v254
        %v743 = vmul.f32 %v738, %v336
        %s744 = scalar_lea.vmem %s1, 40
        %v745 = vld [vmem:[%s744] sm:$0xf]
        %747 = vset.pattern.permute.xlu0 0
        %748 = vperm.xlu0 %747, %v745
        %v749 = vpop.permute.xlu0 %748
        %v751 = vmul.f32 %v749, %v742
        %v752 = vmul.f32 %v749, %v743
        %v753 = vadd.f32 %v732, %v751
        %v754 = vadd.f32 %v733, %v752
        %755 = vrot.lane.b32.xlu0 %v685, 1
        %v756 = vpop.permute.xlu0 %755
        %757 = vrot.lane.b32.xlu0 %v689, 1
        %v758 = vpop.permute.xlu0 %757
        %v759 = vsel %vm355, %v756, %v758
        %v762 = vsel %vm355, 0.0, %v756
        %v763 = vmul.f32 %v762, %v256
        %v764 = vmul.f32 %v759, %v361
        %s765 = scalar_lea.vmem %s1, 56
        %v766 = vld [vmem:[%s765] sm:$0xf]
        %768 = vset.pattern.permute.xlu0 0
        %769 = vperm.xlu0 %768, %v766
        %v770 = vpop.permute.xlu0 %769
        %v772 = vmul.f32 %v770, %v763
        %v773 = vmul.f32 %v770, %v764
        %v774 = vadd.f32 %v753, %v772
        %v775 = vadd.f32 %v754, %v773
        %s776 = scalar_lea.vmem %s1, 72
        %v777 = vld [vmem:[%s776] sm:$0xf]
        %779 = vset.pattern.permute.xlu0 0
        %780 = vperm.xlu0 %779, %v777
        %v781 = vpop.permute.xlu0 %780
        %v783 = vmul.f32 %v781, %v685
        %v784 = vmul.f32 %v781, %v689
        %v785 = vadd.f32 %v774, %v783
        %v786 = vadd.f32 %v775, %v784
        %787 = vrot.lane.b32.xlu0 %v685, 127
        %v788 = vpop.permute.xlu0 %787
        %789 = vrot.lane.b32.xlu0 %v689, 127
        %v790 = vpop.permute.xlu0 %789
        %v791 = vsel %vm391, %v788, %v790
        %v794 = vsel %vm391, %v790, 0.0
        %v795 = vmul.f32 %v791, %v258
        %v796 = vmul.f32 %v794, %v397
        %s797 = scalar_lea.vmem %s1, 88
        %v798 = vld [vmem:[%s797] sm:$0xf]
        %800 = vset.pattern.permute.xlu0 0
        %801 = vperm.xlu0 %800, %v798
        %v802 = vpop.permute.xlu0 %801
        %v804 = vmul.f32 %v802, %v795
        %v805 = vmul.f32 %v802, %v796
        %v806 = vadd.f32 %v785, %v804
        %v807 = vadd.f32 %v786, %v805
        %808 = vrot.lane.b32.xlu0 %v685, 113
        %v809 = vpop.permute.xlu0 %808
        %810 = vrot.lane.b32.xlu0 %v689, 113
        %v811 = vpop.permute.xlu0 %810
        %v812 = vsel %vm416, %v809, %v811
        %v815 = vsel %vm416, %v811, 0.0
        %v816 = vmul.f32 %v812, %v260
        %v817 = vmul.f32 %v815, %v422
        %s818 = scalar_lea.vmem %s1, 104
        %v819 = vld [vmem:[%s818] sm:$0xf]
        %821 = vset.pattern.permute.xlu0 0
        %822 = vperm.xlu0 %821, %v819
        %v823 = vpop.permute.xlu0 %822
        %v825 = vmul.f32 %v823, %v816
        %v826 = vmul.f32 %v823, %v817
        %v827 = vadd.f32 %v806, %v825
        %v828 = vadd.f32 %v807, %v826
        %829 = vrot.lane.b32.xlu0 %v685, 112
        %v830 = vpop.permute.xlu0 %829
        %831 = vrot.lane.b32.xlu0 %v689, 112
        %v832 = vpop.permute.xlu0 %831
        %v833 = vsel %vm441, %v830, %v832
        %v836 = vsel %vm441, %v832, 0.0
        %v837 = vmul.f32 %v833, %v262
        %v838 = vmul.f32 %v836, %v447
        %s839 = scalar_lea.vmem %s1, 120
        %v840 = vld [vmem:[%s839] sm:$0xf]
        %842 = vset.pattern.permute.xlu0 0
        %843 = vperm.xlu0 %842, %v840
        %v844 = vpop.permute.xlu0 %843
        %v846 = vmul.f32 %v844, %v837
        %v847 = vmul.f32 %v844, %v838
        %v848 = vadd.f32 %v827, %v846
        %v849 = vadd.f32 %v828, %v847
        %850 = vrot.lane.b32.xlu0 %v685, 111
        %v851 = vpop.permute.xlu0 %850
        %852 = vrot.lane.b32.xlu0 %v689, 111
        %v853 = vpop.permute.xlu0 %852
        %v854 = vsel %vm466, %v851, %v853
        %v857 = vsel %vm466, %v853, 0.0
        %v858 = vmul.f32 %v854, %v264
        %v859 = vmul.f32 %v857, %v472
        %s860 = scalar_lea.vmem %s1, 136
        %v861 = vld [vmem:[%s860] sm:$0xf]
        %863 = vset.pattern.permute.xlu0 0
        %864 = vperm.xlu0 %863, %v861
        %v865 = vpop.permute.xlu0 %864
        %v867 = vmul.f32 %v865, %v858
        %v868 = vmul.f32 %v865, %v859
        %v869 = vadd.f32 %v848, %v867
        %v870 = vadd.f32 %v849, %v868
        %s871 = scalar_lea.vmem %s249, 3
        %v872 = vld [vmem:[%s871] ss:$4 sm:$0x3]
        %v874 = vlaneseq
        %v875 = vshrl.u32 %v874, 7
        %v876 = vsub.s32 0, %v875
        %v877 = vrot.slane %v872, %v876
        %v878 = vlaneseq
        %v879 = vshrl.u32 %v878, 7
        %v880 = vsub.s32 1, %v879
        %v881 = vrot.slane %v872, %v880
        %884 = vrot.lane.b32.xlu0 %v877, 17
        %v885 = vpop.permute.xlu0 %884
        %886 = vrot.lane.b32.xlu0 %v881, 17
        %v887 = vpop.permute.xlu0 %886
        %v888 = vsel %vm281, %v885, %v887
        %v891 = vsel %vm281, 0.0, %v885
        %v892 = vmul.f32 %v891, %v250
        %v893 = vmul.f32 %v888, %v287
        %s894 = scalar_lea.vmem %s1, 12
        %v895 = vld [vmem:[%s894] sm:$0xf]
        %897 = vset.pattern.permute.xlu0 0
        %898 = vperm.xlu0 %897, %v895
        %v899 = vpop.permute.xlu0 %898
        %v901 = vmul.f32 %v899, %v892
        %v902 = vmul.f32 %v899, %v893
        %v903 = vadd.f32 %v869, %v901
        %v904 = vadd.f32 %v870, %v902
        %905 = vrot.lane.b32.xlu0 %v877, 16
        %v906 = vpop.permute.xlu0 %905
        %907 = vrot.lane.b32.xlu0 %v881, 16
        %v908 = vpop.permute.xlu0 %907
        %v909 = vsel %vm305, %v906, %v908
        %v912 = vsel %vm305, 0.0, %v906
        %v913 = vmul.f32 %v912, %v252
        %v914 = vmul.f32 %v909, %v311
        %s915 = scalar_lea.vmem %s1, 28
        %v916 = vld [vmem:[%s915] sm:$0xf]
        %918 = vset.pattern.permute.xlu0 0
        %919 = vperm.xlu0 %918, %v916
        %v920 = vpop.permute.xlu0 %919
        %v922 = vmul.f32 %v920, %v913
        %v923 = vmul.f32 %v920, %v914
        %v924 = vadd.f32 %v903, %v922
        %v925 = vadd.f32 %v904, %v923
        %926 = vrot.lane.b32.xlu0 %v877, 15
        %v927 = vpop.permute.xlu0 %926
        %928 = vrot.lane.b32.xlu0 %v881, 15
        %v929 = vpop.permute.xlu0 %928
        %v930 = vsel %vm330, %v927, %v929
        %v933 = vsel %vm330, 0.0, %v927
        %v934 = vmul.f32 %v933, %v254
        %v935 = vmul.f32 %v930, %v336
        %s936 = scalar_lea.vmem %s1, 44
        %v937 = vld [vmem:[%s936] sm:$0xf]
        %939 = vset.pattern.permute.xlu0 0
        %940 = vperm.xlu0 %939, %v937
        %v941 = vpop.permute.xlu0 %940
        %v943 = vmul.f32 %v941, %v934
        %v944 = vmul.f32 %v941, %v935
        %v945 = vadd.f32 %v924, %v943
        %v946 = vadd.f32 %v925, %v944
        %947 = vrot.lane.b32.xlu0 %v877, 1
        %v948 = vpop.permute.xlu0 %947
        %949 = vrot.lane.b32.xlu0 %v881, 1
        %v950 = vpop.permute.xlu0 %949
        %v951 = vsel %vm355, %v948, %v950
        %v954 = vsel %vm355, 0.0, %v948
        %v955 = vmul.f32 %v954, %v256
        %v956 = vmul.f32 %v951, %v361
        %s957 = scalar_lea.vmem %s1, 60
        %v958 = vld [vmem:[%s957] sm:$0xf]
        %960 = vset.pattern.permute.xlu0 0
        %961 = vperm.xlu0 %960, %v958
        %v962 = vpop.permute.xlu0 %961
        %v964 = vmul.f32 %v962, %v955
        %v965 = vmul.f32 %v962, %v956
        %v966 = vadd.f32 %v945, %v964
        %v967 = vadd.f32 %v946, %v965
        %s968 = scalar_lea.vmem %s1, 76
        %v969 = vld [vmem:[%s968] sm:$0xf]
        %971 = vset.pattern.permute.xlu0 0
        %972 = vperm.xlu0 %971, %v969
        %v973 = vpop.permute.xlu0 %972
        %v975 = vmul.f32 %v973, %v877
        %v976 = vmul.f32 %v973, %v881
        %v977 = vadd.f32 %v966, %v975
        %v978 = vadd.f32 %v967, %v976
        %979 = vrot.lane.b32.xlu0 %v877, 127
        %v980 = vpop.permute.xlu0 %979
        %981 = vrot.lane.b32.xlu0 %v881, 127
        %v982 = vpop.permute.xlu0 %981
        %v983 = vsel %vm391, %v980, %v982
        %v986 = vsel %vm391, %v982, 0.0
        %v987 = vmul.f32 %v983, %v258
        %v988 = vmul.f32 %v986, %v397
        %s989 = scalar_lea.vmem %s1, 92
        %v990 = vld [vmem:[%s989] sm:$0xf]
        %992 = vset.pattern.permute.xlu0 0
        %993 = vperm.xlu0 %992, %v990
        %v994 = vpop.permute.xlu0 %993
        %v996 = vmul.f32 %v994, %v987
        %v997 = vmul.f32 %v994, %v988
        %v998 = vadd.f32 %v977, %v996
        %v999 = vadd.f32 %v978, %v997
        %1000 = vrot.lane.b32.xlu0 %v877, 113
        %v1001 = vpop.permute.xlu0 %1000
        %1002 = vrot.lane.b32.xlu0 %v881, 113
        %v1003 = vpop.permute.xlu0 %1002
        %v1004 = vsel %vm416, %v1001, %v1003
        %v1007 = vsel %vm416, %v1003, 0.0
        %v1008 = vmul.f32 %v1004, %v260
        %v1009 = vmul.f32 %v1007, %v422
        %s1010 = scalar_lea.vmem %s1, 108
        %v1011 = vld [vmem:[%s1010] sm:$0xf]
        %1013 = vset.pattern.permute.xlu0 0
        %1014 = vperm.xlu0 %1013, %v1011
        %v1015 = vpop.permute.xlu0 %1014
        %v1017 = vmul.f32 %v1015, %v1008
        %v1018 = vmul.f32 %v1015, %v1009
        %v1019 = vadd.f32 %v998, %v1017
        %v1020 = vadd.f32 %v999, %v1018
        %1021 = vrot.lane.b32.xlu0 %v877, 112
        %v1022 = vpop.permute.xlu0 %1021
        %1023 = vrot.lane.b32.xlu0 %v881, 112
        %v1024 = vpop.permute.xlu0 %1023
        %v1025 = vsel %vm441, %v1022, %v1024
        %v1028 = vsel %vm441, %v1024, 0.0
        %v1029 = vmul.f32 %v1025, %v262
        %v1030 = vmul.f32 %v1028, %v447
        %s1031 = scalar_lea.vmem %s1, 124
        %v1032 = vld [vmem:[%s1031] sm:$0xf]
        %1034 = vset.pattern.permute.xlu0 0
        %1035 = vperm.xlu0 %1034, %v1032
        %v1036 = vpop.permute.xlu0 %1035
        %v1038 = vmul.f32 %v1036, %v1029
        %v1039 = vmul.f32 %v1036, %v1030
        %v1040 = vadd.f32 %v1019, %v1038
        %v1041 = vadd.f32 %v1020, %v1039
        %1042 = vrot.lane.b32.xlu0 %v877, 111
        %v1043 = vpop.permute.xlu0 %1042
        %1044 = vrot.lane.b32.xlu0 %v881, 111
        %v1045 = vpop.permute.xlu0 %1044
        %v1046 = vsel %vm466, %v1043, %v1045
        %v1049 = vsel %vm466, %v1045, 0.0
        %v1050 = vmul.f32 %v1046, %v264
        %v1051 = vmul.f32 %v1049, %v472
        %s1052 = scalar_lea.vmem %s1, 140
        %v1053 = vld [vmem:[%s1052] sm:$0xf]
        %1055 = vset.pattern.permute.xlu0 0
        %1056 = vperm.xlu0 %1055, %v1053
        %v1057 = vpop.permute.xlu0 %1056
        %v1059 = vmul.f32 %v1057, %v1050
        %v1060 = vmul.f32 %v1057, %v1051
        %v1061 = vadd.f32 %v1040, %v1059
        %v1062 = vadd.f32 %v1041, %v1060
        %v1063 = vld [vmem:[%s2] sm:$0xf]
        %1065 = vset.pattern.permute.xlu0 0
        %1066 = vperm.xlu0 %1065, %v1063
        %v1067 = vpop.permute.xlu0 %1066
        %v1069 = vadd.f32 %v1061, %v1067
        %v1070 = vadd.f32 %v1062, %v1067
        %v1071 = vmax.f32 %v1069, 0.0
        %v1072 = vmax.f32 %v1070, 0.0
        %v1075 = vcombine.low %v1071, %v1072
        %1077 = vst [vmem:[#allocation2] sm:$0xff] %v1075
        %v1078 = vld [vmem:[#allocation2] ss:$4 sm:$0x3]
        %v1080 = vlaneseq
        %v1081 = vshrl.u32 %v1080, 7
        %v1082 = vsub.s32 0, %v1081
        %v1083 = vrot.slane %v1078, %v1082
        %v1084 = vlaneseq
        %v1085 = vshrl.u32 %v1084, 7
        %v1086 = vsub.s32 1, %v1085
        %v1087 = vrot.slane %v1078, %v1086
        %1090 = vrot.lane.b32.xlu0 %v1083, 17
        %v1091 = vpop.permute.xlu0 %1090
        %1092 = vrot.lane.b32.xlu0 %v1087, 17
        %v1093 = vpop.permute.xlu0 %1092
        %v1094 = vsel %vm281, %v1091, %v1093
        %v1097 = vsel %vm281, 0.0, %v1091
        %v1098 = vmul.f32 %v1097, %v250
        %v1099 = vmul.f32 %v1094, %v287
        %v1100 = vld [vmem:[%s3] sm:$0xf]
        %1102 = vset.pattern.permute.xlu0 0
        %1103 = vperm.xlu0 %1102, %v1100
        %v1104 = vpop.permute.xlu0 %1103
        %v1106 = vmul.f32 %v1104, %v1098
        %v1107 = vmul.f32 %v1104, %v1099
        %v1108 = vadd.f32 %v1106, 0.0
        %v1109 = vadd.f32 %v1107, 0.0
        %1110 = vrot.lane.b32.xlu0 %v1083, 16
        %v1111 = vpop.permute.xlu0 %1110
        %1112 = vrot.lane.b32.xlu0 %v1087, 16
        %v1113 = vpop.permute.xlu0 %1112
        %v1114 = vsel %vm305, %v1111, %v1113
        %v1117 = vsel %vm305, 0.0, %v1111
        %v1118 = vmul.f32 %v1117, %v252
        %v1119 = vmul.f32 %v1114, %v311
        %s1120 = scalar_lea.vmem %s3, 16
        %v1121 = vld [vmem:[%s1120] sm:$0xf]
        %1123 = vset.pattern.permute.xlu0 0
        %1124 = vperm.xlu0 %1123, %v1121
        %v1125 = vpop.permute.xlu0 %1124
        %v1127 = vmul.f32 %v1125, %v1118
        %v1128 = vmul.f32 %v1125, %v1119
        %v1129 = vadd.f32 %v1108, %v1127
        %v1130 = vadd.f32 %v1109, %v1128
        %1131 = vrot.lane.b32.xlu0 %v1083, 15
        %v1132 = vpop.permute.xlu0 %1131
        %1133 = vrot.lane.b32.xlu0 %v1087, 15
        %v1134 = vpop.permute.xlu0 %1133
        %v1135 = vsel %vm330, %v1132, %v1134
        %v1138 = vsel %vm330, 0.0, %v1132
        %v1139 = vmul.f32 %v1138, %v254
        %v1140 = vmul.f32 %v1135, %v336
        %s1141 = scalar_lea.vmem %s3, 32
        %v1142 = vld [vmem:[%s1141] sm:$0xf]
        %1144 = vset.pattern.permute.xlu0 0
        %1145 = vperm.xlu0 %1144, %v1142
        %v1146 = vpop.permute.xlu0 %1145
        %v1148 = vmul.f32 %v1146, %v1139
        %v1149 = vmul.f32 %v1146, %v1140
        %v1150 = vadd.f32 %v1129, %v1148
        %v1151 = vadd.f32 %v1130, %v1149
        %1152 = vrot.lane.b32.xlu0 %v1083, 1
        %v1153 = vpop.permute.xlu0 %1152
        %1154 = vrot.lane.b32.xlu0 %v1087, 1
        %v1155 = vpop.permute.xlu0 %1154
        %v1156 = vsel %vm355, %v1153, %v1155
        %v1159 = vsel %vm355, 0.0, %v1153
        %v1160 = vmul.f32 %v1159, %v256
        %v1161 = vmul.f32 %v1156, %v361
        %s1162 = scalar_lea.vmem %s3, 48
        %v1163 = vld [vmem:[%s1162] sm:$0xf]
        %1165 = vset.pattern.permute.xlu0 0
        %1166 = vperm.xlu0 %1165, %v1163
        %v1167 = vpop.permute.xlu0 %1166
        %v1169 = vmul.f32 %v1167, %v1160
        %v1170 = vmul.f32 %v1167, %v1161
        %v1171 = vadd.f32 %v1150, %v1169
        %v1172 = vadd.f32 %v1151, %v1170
        %s1173 = scalar_lea.vmem %s3, 64
        %v1174 = vld [vmem:[%s1173] sm:$0xf]
        %1176 = vset.pattern.permute.xlu0 0
        %1177 = vperm.xlu0 %1176, %v1174
        %v1178 = vpop.permute.xlu0 %1177
        %v1180 = vmul.f32 %v1178, %v1083
        %v1181 = vmul.f32 %v1178, %v1087
        %v1182 = vadd.f32 %v1171, %v1180
        %v1183 = vadd.f32 %v1172, %v1181
        %1184 = vrot.lane.b32.xlu0 %v1083, 127
        %v1185 = vpop.permute.xlu0 %1184
        %1186 = vrot.lane.b32.xlu0 %v1087, 127
        %v1187 = vpop.permute.xlu0 %1186
        %v1188 = vsel %vm391, %v1185, %v1187
        %v1191 = vsel %vm391, %v1187, 0.0
        %v1192 = vmul.f32 %v1188, %v258
        %v1193 = vmul.f32 %v1191, %v397
        %s1194 = scalar_lea.vmem %s3, 80
        %v1195 = vld [vmem:[%s1194] sm:$0xf]
        %1197 = vset.pattern.permute.xlu0 0
        %1198 = vperm.xlu0 %1197, %v1195
        %v1199 = vpop.permute.xlu0 %1198
        %v1201 = vmul.f32 %v1199, %v1192
        %v1202 = vmul.f32 %v1199, %v1193
        %v1203 = vadd.f32 %v1182, %v1201
        %v1204 = vadd.f32 %v1183, %v1202
        %1205 = vrot.lane.b32.xlu0 %v1083, 113
        %v1206 = vpop.permute.xlu0 %1205
        %1207 = vrot.lane.b32.xlu0 %v1087, 113
        %v1208 = vpop.permute.xlu0 %1207
        %v1209 = vsel %vm416, %v1206, %v1208
        %v1212 = vsel %vm416, %v1208, 0.0
        %v1213 = vmul.f32 %v1209, %v260
        %v1214 = vmul.f32 %v1212, %v422
        %s1215 = scalar_lea.vmem %s3, 96
        %v1216 = vld [vmem:[%s1215] sm:$0xf]
        %1218 = vset.pattern.permute.xlu0 0
        %1219 = vperm.xlu0 %1218, %v1216
        %v1220 = vpop.permute.xlu0 %1219
        %v1222 = vmul.f32 %v1220, %v1213
        %v1223 = vmul.f32 %v1220, %v1214
        %v1224 = vadd.f32 %v1203, %v1222
        %v1225 = vadd.f32 %v1204, %v1223
        %1226 = vrot.lane.b32.xlu0 %v1083, 112
        %v1227 = vpop.permute.xlu0 %1226
        %1228 = vrot.lane.b32.xlu0 %v1087, 112
        %v1229 = vpop.permute.xlu0 %1228
        %v1230 = vsel %vm441, %v1227, %v1229
        %v1233 = vsel %vm441, %v1229, 0.0
        %v1234 = vmul.f32 %v1230, %v262
        %v1235 = vmul.f32 %v1233, %v447
        %s1236 = scalar_lea.vmem %s3, 112
        %v1237 = vld [vmem:[%s1236] sm:$0xf]
        %1239 = vset.pattern.permute.xlu0 0
        %1240 = vperm.xlu0 %1239, %v1237
        %v1241 = vpop.permute.xlu0 %1240
        %v1243 = vmul.f32 %v1241, %v1234
        %v1244 = vmul.f32 %v1241, %v1235
        %v1245 = vadd.f32 %v1224, %v1243
        %v1246 = vadd.f32 %v1225, %v1244
        %1247 = vrot.lane.b32.xlu0 %v1083, 111
        %v1248 = vpop.permute.xlu0 %1247
        %1249 = vrot.lane.b32.xlu0 %v1087, 111
        %v1250 = vpop.permute.xlu0 %1249
        %v1251 = vsel %vm466, %v1248, %v1250
        %v1254 = vsel %vm466, %v1250, 0.0
        %v1255 = vmul.f32 %v1251, %v264
        %v1256 = vmul.f32 %v1254, %v472
        %s1257 = scalar_lea.vmem %s3, 128
        %v1258 = vld [vmem:[%s1257] sm:$0xf]
        %1260 = vset.pattern.permute.xlu0 0
        %1261 = vperm.xlu0 %1260, %v1258
        %v1262 = vpop.permute.xlu0 %1261
        %v1264 = vmul.f32 %v1262, %v1255
        %v1265 = vmul.f32 %v1262, %v1256
        %v1266 = vadd.f32 %v1245, %v1264
        %v1267 = vadd.f32 %v1246, %v1265
        %s1268 = scalar_lea.vmem [#allocation2], 1
        %v1269 = vld [vmem:[%s1268] ss:$4 sm:$0x3]
        %v1271 = vlaneseq
        %v1272 = vshrl.u32 %v1271, 7
        %v1273 = vsub.s32 0, %v1272
        %v1274 = vrot.slane %v1269, %v1273
        %v1275 = vlaneseq
        %v1276 = vshrl.u32 %v1275, 7
        %v1277 = vsub.s32 1, %v1276
        %v1278 = vrot.slane %v1269, %v1277
        %1281 = vrot.lane.b32.xlu0 %v1274, 17
        %v1282 = vpop.permute.xlu0 %1281
        %1283 = vrot.lane.b32.xlu0 %v1278, 17
        %v1284 = vpop.permute.xlu0 %1283
        %v1285 = vsel %vm281, %v1282, %v1284
        %v1288 = vsel %vm281, 0.0, %v1282
        %v1289 = vmul.f32 %v1288, %v250
        %v1290 = vmul.f32 %v1285, %v287
        %s1291 = scalar_lea.vmem %s3, 4
        %v1292 = vld [vmem:[%s1291] sm:$0xf]
        %1294 = vset.pattern.permute.xlu0 0
        %1295 = vperm.xlu0 %1294, %v1292
        %v1296 = vpop.permute.xlu0 %1295
        %v1298 = vmul.f32 %v1296, %v1289
        %v1299 = vmul.f32 %v1296, %v1290
        %v1300 = vadd.f32 %v1266, %v1298
        %v1301 = vadd.f32 %v1267, %v1299
        %1302 = vrot.lane.b32.xlu0 %v1274, 16
        %v1303 = vpop.permute.xlu0 %1302
        %1304 = vrot.lane.b32.xlu0 %v1278, 16
        %v1305 = vpop.permute.xlu0 %1304
        %v1306 = vsel %vm305, %v1303, %v1305
        %v1309 = vsel %vm305, 0.0, %v1303
        %v1310 = vmul.f32 %v1309, %v252
        %v1311 = vmul.f32 %v1306, %v311
        %s1312 = scalar_lea.vmem %s3, 20
        %v1313 = vld [vmem:[%s1312] sm:$0xf]
        %1315 = vset.pattern.permute.xlu0 0
        %1316 = vperm.xlu0 %1315, %v1313
        %v1317 = vpop.permute.xlu0 %1316
        %v1319 = vmul.f32 %v1317, %v1310
        %v1320 = vmul.f32 %v1317, %v1311
        %v1321 = vadd.f32 %v1300, %v1319
        %v1322 = vadd.f32 %v1301, %v1320
        %1323 = vrot.lane.b32.xlu0 %v1274, 15
        %v1324 = vpop.permute.xlu0 %1323
        %1325 = vrot.lane.b32.xlu0 %v1278, 15
        %v1326 = vpop.permute.xlu0 %1325
        %v1327 = vsel %vm330, %v1324, %v1326
        %v1330 = vsel %vm330, 0.0, %v1324
        %v1331 = vmul.f32 %v1330, %v254
        %v1332 = vmul.f32 %v1327, %v336
        %s1333 = scalar_lea.vmem %s3, 36
        %v1334 = vld [vmem:[%s1333] sm:$0xf]
        %1336 = vset.pattern.permute.xlu0 0
        %1337 = vperm.xlu0 %1336, %v1334
        %v1338 = vpop.permute.xlu0 %1337
        %v1340 = vmul.f32 %v1338, %v1331
        %v1341 = vmul.f32 %v1338, %v1332
        %v1342 = vadd.f32 %v1321, %v1340
        %v1343 = vadd.f32 %v1322, %v1341
        %1344 = vrot.lane.b32.xlu0 %v1274, 1
        %v1345 = vpop.permute.xlu0 %1344
        %1346 = vrot.lane.b32.xlu0 %v1278, 1
        %v1347 = vpop.permute.xlu0 %1346
        %v1348 = vsel %vm355, %v1345, %v1347
        %v1351 = vsel %vm355, 0.0, %v1345
        %v1352 = vmul.f32 %v1351, %v256
        %v1353 = vmul.f32 %v1348, %v361
        %s1354 = scalar_lea.vmem %s3, 52
        %v1355 = vld [vmem:[%s1354] sm:$0xf]
        %1357 = vset.pattern.permute.xlu0 0
        %1358 = vperm.xlu0 %1357, %v1355
        %v1359 = vpop.permute.xlu0 %1358
        %v1361 = vmul.f32 %v1359, %v1352
        %v1362 = vmul.f32 %v1359, %v1353
        %v1363 = vadd.f32 %v1342, %v1361
        %v1364 = vadd.f32 %v1343, %v1362
        %s1365 = scalar_lea.vmem %s3, 68
        %v1366 = vld [vmem:[%s1365] sm:$0xf]
        %1368 = vset.pattern.permute.xlu0 0
        %1369 = vperm.xlu0 %1368, %v1366
        %v1370 = vpop.permute.xlu0 %1369
        %v1372 = vmul.f32 %v1370, %v1274
        %v1373 = vmul.f32 %v1370, %v1278
        %v1374 = vadd.f32 %v1363, %v1372
        %v1375 = vadd.f32 %v1364, %v1373
        %1376 = vrot.lane.b32.xlu0 %v1274, 127
        %v1377 = vpop.permute.xlu0 %1376
        %1378 = vrot.lane.b32.xlu0 %v1278, 127
        %v1379 = vpop.permute.xlu0 %1378
        %v1380 = vsel %vm391, %v1377, %v1379
        %v1383 = vsel %vm391, %v1379, 0.0
        %v1384 = vmul.f32 %v1380, %v258
        %v1385 = vmul.f32 %v1383, %v397
        %s1386 = scalar_lea.vmem %s3, 84
        %v1387 = vld [vmem:[%s1386] sm:$0xf]
        %1389 = vset.pattern.permute.xlu0 0
        %1390 = vperm.xlu0 %1389, %v1387
        %v1391 = vpop.permute.xlu0 %1390
        %v1393 = vmul.f32 %v1391, %v1384
        %v1394 = vmul.f32 %v1391, %v1385
        %v1395 = vadd.f32 %v1374, %v1393
        %v1396 = vadd.f32 %v1375, %v1394
        %1397 = vrot.lane.b32.xlu0 %v1274, 113
        %v1398 = vpop.permute.xlu0 %1397
        %1399 = vrot.lane.b32.xlu0 %v1278, 113
        %v1400 = vpop.permute.xlu0 %1399
        %v1401 = vsel %vm416, %v1398, %v1400
        %v1404 = vsel %vm416, %v1400, 0.0
        %v1405 = vmul.f32 %v1401, %v260
        %v1406 = vmul.f32 %v1404, %v422
        %s1407 = scalar_lea.vmem %s3, 100
        %v1408 = vld [vmem:[%s1407] sm:$0xf]
        %1410 = vset.pattern.permute.xlu0 0
        %1411 = vperm.xlu0 %1410, %v1408
        %v1412 = vpop.permute.xlu0 %1411
        %v1414 = vmul.f32 %v1412, %v1405
        %v1415 = vmul.f32 %v1412, %v1406
        %v1416 = vadd.f32 %v1395, %v1414
        %v1417 = vadd.f32 %v1396, %v1415
        %1418 = vrot.lane.b32.xlu0 %v1274, 112
        %v1419 = vpop.permute.xlu0 %1418
        %1420 = vrot.lane.b32.xlu0 %v1278, 112
        %v1421 = vpop.permute.xlu0 %1420
        %v1422 = vsel %vm441, %v1419, %v1421
        %v1425 = vsel %vm441, %v1421, 0.0
        %v1426 = vmul.f32 %v1422, %v262
        %v1427 = vmul.f32 %v1425, %v447
        %s1428 = scalar_lea.vmem %s3, 116
        %v1429 = vld [vmem:[%s1428] sm:$0xf]
        %1431 = vset.pattern.permute.xlu0 0
        %1432 = vperm.xlu0 %1431, %v1429
        %v1433 = vpop.permute.xlu0 %1432
        %v1435 = vmul.f32 %v1433, %v1426
        %v1436 = vmul.f32 %v1433, %v1427
        %v1437 = vadd.f32 %v1416, %v1435
        %v1438 = vadd.f32 %v1417, %v1436
        %1439 = vrot.lane.b32.xlu0 %v1274, 111
        %v1440 = vpop.permute.xlu0 %1439
        %1441 = vrot.lane.b32.xlu0 %v1278, 111
        %v1442 = vpop.permute.xlu0 %1441
        %v1443 = vsel %vm466, %v1440, %v1442
        %v1446 = vsel %vm466, %v1442, 0.0
        %v1447 = vmul.f32 %v1443, %v264
        %v1448 = vmul.f32 %v1446, %v472
        %s1449 = scalar_lea.vmem %s3, 132
        %v1450 = vld [vmem:[%s1449] sm:$0xf]
        %1452 = vset.pattern.permute.xlu0 0
        %1453 = vperm.xlu0 %1452, %v1450
        %v1454 = vpop.permute.xlu0 %1453
        %v1456 = vmul.f32 %v1454, %v1447
        %v1457 = vmul.f32 %v1454, %v1448
        %v1458 = vadd.f32 %v1437, %v1456
        %v1459 = vadd.f32 %v1438, %v1457
        %s1460 = scalar_lea.vmem [#allocation2], 2
        %v1461 = vld [vmem:[%s1460] ss:$4 sm:$0x3]
        %v1463 = vlaneseq
        %v1464 = vshrl.u32 %v1463, 7
        %v1465 = vsub.s32 0, %v1464
        %v1466 = vrot.slane %v1461, %v1465
        %v1467 = vlaneseq
        %v1468 = vshrl.u32 %v1467, 7
        %v1469 = vsub.s32 1, %v1468
        %v1470 = vrot.slane %v1461, %v1469
        %1473 = vrot.lane.b32.xlu0 %v1466, 17
        %v1474 = vpop.permute.xlu0 %1473
        %1475 = vrot.lane.b32.xlu0 %v1470, 17
        %v1476 = vpop.permute.xlu0 %1475
        %v1477 = vsel %vm281, %v1474, %v1476
        %v1480 = vsel %vm281, 0.0, %v1474
        %v1481 = vmul.f32 %v1480, %v250
        %v1482 = vmul.f32 %v1477, %v287
        %s1483 = scalar_lea.vmem %s3, 8
        %v1484 = vld [vmem:[%s1483] sm:$0xf]
        %1486 = vset.pattern.permute.xlu0 0
        %1487 = vperm.xlu0 %1486, %v1484
        %v1488 = vpop.permute.xlu0 %1487
        %v1490 = vmul.f32 %v1488, %v1481
        %v1491 = vmul.f32 %v1488, %v1482
        %v1492 = vadd.f32 %v1458, %v1490
        %v1493 = vadd.f32 %v1459, %v1491
        %1494 = vrot.lane.b32.xlu0 %v1466, 16
        %v1495 = vpop.permute.xlu0 %1494
        %1496 = vrot.lane.b32.xlu0 %v1470, 16
        %v1497 = vpop.permute.xlu0 %1496
        %v1498 = vsel %vm305, %v1495, %v1497
        %v1501 = vsel %vm305, 0.0, %v1495
        %v1502 = vmul.f32 %v1501, %v252
        %v1503 = vmul.f32 %v1498, %v311
        %s1504 = scalar_lea.vmem %s3, 24
        %v1505 = vld [vmem:[%s1504] sm:$0xf]
        %1507 = vset.pattern.permute.xlu0 0
        %1508 = vperm.xlu0 %1507, %v1505
        %v1509 = vpop.permute.xlu0 %1508
        %v1511 = vmul.f32 %v1509, %v1502
        %v1512 = vmul.f32 %v1509, %v1503
        %v1513 = vadd.f32 %v1492, %v1511
        %v1514 = vadd.f32 %v1493, %v1512
        %1515 = vrot.lane.b32.xlu0 %v1466, 15
        %v1516 = vpop.permute.xlu0 %1515
        %1517 = vrot.lane.b32.xlu0 %v1470, 15
        %v1518 = vpop.permute.xlu0 %1517
        %v1519 = vsel %vm330, %v1516, %v1518
        %v1522 = vsel %vm330, 0.0, %v1516
        %v1523 = vmul.f32 %v1522, %v254
        %v1524 = vmul.f32 %v1519, %v336
        %s1525 = scalar_lea.vmem %s3, 40
        %v1526 = vld [vmem:[%s1525] sm:$0xf]
        %1528 = vset.pattern.permute.xlu0 0
        %1529 = vperm.xlu0 %1528, %v1526
        %v1530 = vpop.permute.xlu0 %1529
        %v1532 = vmul.f32 %v1530, %v1523
        %v1533 = vmul.f32 %v1530, %v1524
        %v1534 = vadd.f32 %v1513, %v1532
        %v1535 = vadd.f32 %v1514, %v1533
        %1536 = vrot.lane.b32.xlu0 %v1466, 1
        %v1537 = vpop.permute.xlu0 %1536
        %1538 = vrot.lane.b32.xlu0 %v1470, 1
        %v1539 = vpop.permute.xlu0 %1538
        %v1540 = vsel %vm355, %v1537, %v1539
        %v1543 = vsel %vm355, 0.0, %v1537
        %v1544 = vmul.f32 %v1543, %v256
        %v1545 = vmul.f32 %v1540, %v361
        %s1546 = scalar_lea.vmem %s3, 56
        %v1547 = vld [vmem:[%s1546] sm:$0xf]
        %1549 = vset.pattern.permute.xlu0 0
        %1550 = vperm.xlu0 %1549, %v1547
        %v1551 = vpop.permute.xlu0 %1550
        %v1553 = vmul.f32 %v1551, %v1544
        %v1554 = vmul.f32 %v1551, %v1545
        %v1555 = vadd.f32 %v1534, %v1553
        %v1556 = vadd.f32 %v1535, %v1554
        %s1557 = scalar_lea.vmem %s3, 72
        %v1558 = vld [vmem:[%s1557] sm:$0xf]
        %1560 = vset.pattern.permute.xlu0 0
        %1561 = vperm.xlu0 %1560, %v1558
        %v1562 = vpop.permute.xlu0 %1561
        %v1564 = vmul.f32 %v1562, %v1466
        %v1565 = vmul.f32 %v1562, %v1470
        %v1566 = vadd.f32 %v1555, %v1564
        %v1567 = vadd.f32 %v1556, %v1565
        %1568 = vrot.lane.b32.xlu0 %v1466, 127
        %v1569 = vpop.permute.xlu0 %1568
        %1570 = vrot.lane.b32.xlu0 %v1470, 127
        %v1571 = vpop.permute.xlu0 %1570
        %v1572 = vsel %vm391, %v1569, %v1571
        %v1575 = vsel %vm391, %v1571, 0.0
        %v1576 = vmul.f32 %v1572, %v258
        %v1577 = vmul.f32 %v1575, %v397
        %s1578 = scalar_lea.vmem %s3, 88
        %v1579 = vld [vmem:[%s1578] sm:$0xf]
        %1581 = vset.pattern.permute.xlu0 0
        %1582 = vperm.xlu0 %1581, %v1579
        %v1583 = vpop.permute.xlu0 %1582
        %v1585 = vmul.f32 %v1583, %v1576
        %v1586 = vmul.f32 %v1583, %v1577
        %v1587 = vadd.f32 %v1566, %v1585
        %v1588 = vadd.f32 %v1567, %v1586
        %1589 = vrot.lane.b32.xlu0 %v1466, 113
        %v1590 = vpop.permute.xlu0 %1589
        %1591 = vrot.lane.b32.xlu0 %v1470, 113
        %v1592 = vpop.permute.xlu0 %1591
        %v1593 = vsel %vm416, %v1590, %v1592
        %v1596 = vsel %vm416, %v1592, 0.0
        %v1597 = vmul.f32 %v1593, %v260
        %v1598 = vmul.f32 %v1596, %v422
        %s1599 = scalar_lea.vmem %s3, 104
        %v1600 = vld [vmem:[%s1599] sm:$0xf]
        %1602 = vset.pattern.permute.xlu0 0
        %1603 = vperm.xlu0 %1602, %v1600
        %v1604 = vpop.permute.xlu0 %1603
        %v1606 = vmul.f32 %v1604, %v1597
        %v1607 = vmul.f32 %v1604, %v1598
        %v1608 = vadd.f32 %v1587, %v1606
        %v1609 = vadd.f32 %v1588, %v1607
        %1610 = vrot.lane.b32.xlu0 %v1466, 112
        %v1611 = vpop.permute.xlu0 %1610
        %1612 = vrot.lane.b32.xlu0 %v1470, 112
        %v1613 = vpop.permute.xlu0 %1612
        %v1614 = vsel %vm441, %v1611, %v1613
        %v1617 = vsel %vm441, %v1613, 0.0
        %v1618 = vmul.f32 %v1614, %v262
        %v1619 = vmul.f32 %v1617, %v447
        %s1620 = scalar_lea.vmem %s3, 120
        %v1621 = vld [vmem:[%s1620] sm:$0xf]
        %1623 = vset.pattern.permute.xlu0 0
        %1624 = vperm.xlu0 %1623, %v1621
        %v1625 = vpop.permute.xlu0 %1624
        %v1627 = vmul.f32 %v1625, %v1618
        %v1628 = vmul.f32 %v1625, %v1619
        %v1629 = vadd.f32 %v1608, %v1627
        %v1630 = vadd.f32 %v1609, %v1628
        %1631 = vrot.lane.b32.xlu0 %v1466, 111
        %v1632 = vpop.permute.xlu0 %1631
        %1633 = vrot.lane.b32.xlu0 %v1470, 111
        %v1634 = vpop.permute.xlu0 %1633
        %v1635 = vsel %vm466, %v1632, %v1634
        %v1638 = vsel %vm466, %v1634, 0.0
        %v1639 = vmul.f32 %v1635, %v264
        %v1640 = vmul.f32 %v1638, %v472
        %s1641 = scalar_lea.vmem %s3, 136
        %v1642 = vld [vmem:[%s1641] sm:$0xf]
        %1644 = vset.pattern.permute.xlu0 0
        %1645 = vperm.xlu0 %1644, %v1642
        %v1646 = vpop.permute.xlu0 %1645
        %v1648 = vmul.f32 %v1646, %v1639
        %v1649 = vmul.f32 %v1646, %v1640
        %v1650 = vadd.f32 %v1629, %v1648
        %v1651 = vadd.f32 %v1630, %v1649
        %s1652 = scalar_lea.vmem [#allocation2], 3
        %v1653 = vld [vmem:[%s1652] ss:$4 sm:$0x3]
        %v1655 = vlaneseq
        %v1656 = vshrl.u32 %v1655, 7
        %v1657 = vsub.s32 0, %v1656
        %v1658 = vrot.slane %v1653, %v1657
        %v1659 = vlaneseq
        %v1660 = vshrl.u32 %v1659, 7
        %v1661 = vsub.s32 1, %v1660
        %v1662 = vrot.slane %v1653, %v1661
        %1665 = vrot.lane.b32.xlu0 %v1658, 17
        %v1666 = vpop.permute.xlu0 %1665
        %1667 = vrot.lane.b32.xlu0 %v1662, 17
        %v1668 = vpop.permute.xlu0 %1667
        %v1669 = vsel %vm281, %v1666, %v1668
        %v1672 = vsel %vm281, 0.0, %v1666
        %v1673 = vmul.f32 %v1672, %v250
        %v1674 = vmul.f32 %v1669, %v287
        %s1675 = scalar_lea.vmem %s3, 12
        %v1676 = vld [vmem:[%s1675] sm:$0xf]
        %1678 = vset.pattern.permute.xlu0 0
        %1679 = vperm.xlu0 %1678, %v1676
        %v1680 = vpop.permute.xlu0 %1679
        %v1682 = vmul.f32 %v1680, %v1673
        %v1683 = vmul.f32 %v1680, %v1674
        %v1684 = vadd.f32 %v1650, %v1682
        %v1685 = vadd.f32 %v1651, %v1683
        %1686 = vrot.lane.b32.xlu0 %v1658, 16
        %v1687 = vpop.permute.xlu0 %1686
        %1688 = vrot.lane.b32.xlu0 %v1662, 16
        %v1689 = vpop.permute.xlu0 %1688
        %v1690 = vsel %vm305, %v1687, %v1689
        %v1693 = vsel %vm305, 0.0, %v1687
        %v1694 = vmul.f32 %v1693, %v252
        %v1695 = vmul.f32 %v1690, %v311
        %s1696 = scalar_lea.vmem %s3, 28
        %v1697 = vld [vmem:[%s1696] sm:$0xf]
        %1699 = vset.pattern.permute.xlu0 0
        %1700 = vperm.xlu0 %1699, %v1697
        %v1701 = vpop.permute.xlu0 %1700
        %v1703 = vmul.f32 %v1701, %v1694
        %v1704 = vmul.f32 %v1701, %v1695
        %v1705 = vadd.f32 %v1684, %v1703
        %v1706 = vadd.f32 %v1685, %v1704
        %1707 = vrot.lane.b32.xlu0 %v1658, 15
        %v1708 = vpop.permute.xlu0 %1707
        %1709 = vrot.lane.b32.xlu0 %v1662, 15
        %v1710 = vpop.permute.xlu0 %1709
        %v1711 = vsel %vm330, %v1708, %v1710
        %v1714 = vsel %vm330, 0.0, %v1708
        %v1715 = vmul.f32 %v1714, %v254
        %v1716 = vmul.f32 %v1711, %v336
        %s1717 = scalar_lea.vmem %s3, 44
        %v1718 = vld [vmem:[%s1717] sm:$0xf]
        %1720 = vset.pattern.permute.xlu0 0
        %1721 = vperm.xlu0 %1720, %v1718
        %v1722 = vpop.permute.xlu0 %1721
        %v1724 = vmul.f32 %v1722, %v1715
        %v1725 = vmul.f32 %v1722, %v1716
        %v1726 = vadd.f32 %v1705, %v1724
        %v1727 = vadd.f32 %v1706, %v1725
        %1728 = vrot.lane.b32.xlu0 %v1658, 1
        %v1729 = vpop.permute.xlu0 %1728
        %1730 = vrot.lane.b32.xlu0 %v1662, 1
        %v1731 = vpop.permute.xlu0 %1730
        %v1732 = vsel %vm355, %v1729, %v1731
        %v1735 = vsel %vm355, 0.0, %v1729
        %v1736 = vmul.f32 %v1735, %v256
        %v1737 = vmul.f32 %v1732, %v361
        %s1738 = scalar_lea.vmem %s3, 60
        %v1739 = vld [vmem:[%s1738] sm:$0xf]
        %1741 = vset.pattern.permute.xlu0 0
        %1742 = vperm.xlu0 %1741, %v1739
        %v1743 = vpop.permute.xlu0 %1742
        %v1745 = vmul.f32 %v1743, %v1736
        %v1746 = vmul.f32 %v1743, %v1737
        %v1747 = vadd.f32 %v1726, %v1745
        %v1748 = vadd.f32 %v1727, %v1746
        %s1749 = scalar_lea.vmem %s3, 76
        %v1750 = vld [vmem:[%s1749] sm:$0xf]
        %1752 = vset.pattern.permute.xlu0 0
        %1753 = vperm.xlu0 %1752, %v1750
        %v1754 = vpop.permute.xlu0 %1753
        %v1756 = vmul.f32 %v1754, %v1658
        %v1757 = vmul.f32 %v1754, %v1662
        %v1758 = vadd.f32 %v1747, %v1756
        %v1759 = vadd.f32 %v1748, %v1757
        %1760 = vrot.lane.b32.xlu0 %v1658, 127
        %v1761 = vpop.permute.xlu0 %1760
        %1762 = vrot.lane.b32.xlu0 %v1662, 127
        %v1763 = vpop.permute.xlu0 %1762
        %v1764 = vsel %vm391, %v1761, %v1763
        %v1767 = vsel %vm391, %v1763, 0.0
        %v1768 = vmul.f32 %v1764, %v258
        %v1769 = vmul.f32 %v1767, %v397
        %s1770 = scalar_lea.vmem %s3, 92
        %v1771 = vld [vmem:[%s1770] sm:$0xf]
        %1773 = vset.pattern.permute.xlu0 0
        %1774 = vperm.xlu0 %1773, %v1771
        %v1775 = vpop.permute.xlu0 %1774
        %v1777 = vmul.f32 %v1775, %v1768
        %v1778 = vmul.f32 %v1775, %v1769
        %v1779 = vadd.f32 %v1758, %v1777
        %v1780 = vadd.f32 %v1759, %v1778
        %1781 = vrot.lane.b32.xlu0 %v1658, 113
        %v1782 = vpop.permute.xlu0 %1781
        %1783 = vrot.lane.b32.xlu0 %v1662, 113
        %v1784 = vpop.permute.xlu0 %1783
        %v1785 = vsel %vm416, %v1782, %v1784
        %v1788 = vsel %vm416, %v1784, 0.0
        %v1789 = vmul.f32 %v1785, %v260
        %v1790 = vmul.f32 %v1788, %v422
        %s1791 = scalar_lea.vmem %s3, 108
        %v1792 = vld [vmem:[%s1791] sm:$0xf]
        %1794 = vset.pattern.permute.xlu0 0
        %1795 = vperm.xlu0 %1794, %v1792
        %v1796 = vpop.permute.xlu0 %1795
        %v1798 = vmul.f32 %v1796, %v1789
        %v1799 = vmul.f32 %v1796, %v1790
        %v1800 = vadd.f32 %v1779, %v1798
        %v1801 = vadd.f32 %v1780, %v1799
        %1802 = vrot.lane.b32.xlu0 %v1658, 112
        %v1803 = vpop.permute.xlu0 %1802
        %1804 = vrot.lane.b32.xlu0 %v1662, 112
        %v1805 = vpop.permute.xlu0 %1804
        %v1806 = vsel %vm441, %v1803, %v1805
        %v1809 = vsel %vm441, %v1805, 0.0
        %v1810 = vmul.f32 %v1806, %v262
        %v1811 = vmul.f32 %v1809, %v447
        %s1812 = scalar_lea.vmem %s3, 124
        %v1813 = vld [vmem:[%s1812] sm:$0xf]
        %1815 = vset.pattern.permute.xlu0 0
        %1816 = vperm.xlu0 %1815, %v1813
        %v1817 = vpop.permute.xlu0 %1816
        %v1819 = vmul.f32 %v1817, %v1810
        %v1820 = vmul.f32 %v1817, %v1811
        %v1821 = vadd.f32 %v1800, %v1819
        %v1822 = vadd.f32 %v1801, %v1820
        %1823 = vrot.lane.b32.xlu0 %v1658, 111
        %v1824 = vpop.permute.xlu0 %1823
        %1825 = vrot.lane.b32.xlu0 %v1662, 111
        %v1826 = vpop.permute.xlu0 %1825
        %v1827 = vsel %vm466, %v1824, %v1826
        %v1830 = vsel %vm466, %v1826, 0.0
        %v1831 = vmul.f32 %v1827, %v264
        %v1832 = vmul.f32 %v1830, %v472
        %s1833 = scalar_lea.vmem %s3, 140
        %v1834 = vld [vmem:[%s1833] sm:$0xf]
        %1836 = vset.pattern.permute.xlu0 0
        %1837 = vperm.xlu0 %1836, %v1834
        %v1838 = vpop.permute.xlu0 %1837
        %v1840 = vmul.f32 %v1838, %v1831
        %v1841 = vmul.f32 %v1838, %v1832
        %v1842 = vadd.f32 %v1821, %v1840
        %v1843 = vadd.f32 %v1822, %v1841
        %v1844 = vld [vmem:[%s4] sm:$0xf]
        %1846 = vset.pattern.permute.xlu0 0
        %1847 = vperm.xlu0 %1846, %v1844
        %v1848 = vpop.permute.xlu0 %1847
        %v1850 = vadd.f32 %v1842, %v1848
        %v1851 = vadd.f32 %v1843, %v1848
        %v1852 = vld [vmem:[%s249] sm:$0xff]
        %v1854 = vcombine.high %v1852, %v1852
        %v1856 = vadd.f32 %v1850, %v1852
        %v1857 = vadd.f32 %v1851, %v1854
        %v1860 = vcombine.low %v1856, %v1857
        %1862 = vst [vmem:[%s244] sm:$0xff] %v1860
        %s1863 = sand.u32 %s159, 1
        %s1864 = scalar_lea.sflag [#allocation4], %s1863
        %s1865 = sand.u32 %s159, 1
        %s1866 = smul.addr %s1865, 8
        %s1867 = scalar_lea.vmem [#allocation3], %s1866
        // Predicated region
        $region45: #{tpu_custom_call.1} parent=43 // pred_check
          %p1868 = pneg %p169
        $region46: #{tpu_custom_call.1} parent=43 // pred_check_branch
          %1870 = sbr.rel (%p1868) target = $region48
        $region47: #{tpu_custom_call.1} parent=43 // pred_region
          %s1872 = ssub.s32 128, 128
          %1873 = vsyncadd %s1864, %s1872
          %s1874 = smul.addr %s20, 2
          %s1875 = smul.addr %s1874, 64
          %s1876 = scalar_lea.hbm %s6, %s1875
          %s1878 = sshll.u32 %s1867, 4
          %s1879 = int_to_ptr.vmem [resolvable:$true] %s1878
          %1881 = dma.vmem_to_hbm [thread:$0]  %s1879, 128, %s1876, %s1864
        $region48: #{tpu_custom_call.1} parent=43 // pred_fallthru
          _
      $region44: #{tpu_custom_call.1} parent=5 // pred_fallthru
        _
      %p1882 = scmp.le.s32.totalorder 2, %s15
      // Predicated region
      $region49: #{tpu_custom_call.1} parent=5 // pred_check
        %p1883 = pneg %p1882
      $region50: #{tpu_custom_call.1} parent=5 // pred_check_branch
        %1885 = sbr.rel (%p1883) target = $region52
      $region51: #{tpu_custom_call.1} parent=5 // pred_region
        %s1886 = ssub.s32 %s15, 2
        // Predicated region
        $region53: #{tpu_custom_call.1} parent=51 // pred_check
          %p1887 = pneg %p175
        $region54: #{tpu_custom_call.1} parent=51 // pred_check_branch
          %1889 = sbr.rel (%p1887) target = $region56
        $region55: #{tpu_custom_call.1} parent=51 // pred_region
          %s1890 = sand.u32 %s160, 1
          %s1891 = scalar_lea.sflag [#allocation4], %s1890
          %s1892 = sand.u32 %s160, 1
          %s1893 = smul.addr %s1892, 8
          %s1894 = scalar_lea.vmem [#allocation3], %s1893
          %1895 = dma.done %s1891, 128
        $region56: #{tpu_custom_call.1} parent=51 // pred_fallthru
          _
      $region52: #{tpu_custom_call.1} parent=5 // pred_fallthru
        _
    $region6: #{tpu_custom_call.1} parent=1 // loop_footer
      %s19 = sadd.s32 1, %s15
    $region7: #{tpu_custom_call.1} parent=1 // loop_footer_branch
      %14 = sbr.rel target = $region3
    $region8: #{tpu_custom_call.1} parent=1 // loop_exit
      _
    %1896 = vsyncpa [#allocation4], 1
    %s1897 = scalar_lea.sflag [#allocation4], 1
    %1898 = vsyncpa %s1897, 1

</llo_original>
